<compile_context>
chip_gen: v7x
topology: tpu7x:2x2x1
jax: 0.10.0
libtpu: 0.0.40
codegen_flags: <defaults>
</compile_context>

<pallas_src>
import jax
import jax.numpy as jnp
from jax.experimental import pallas as pl
from jax.experimental.pallas import tpu as pltpu


def lstmdqn_kernel(xa_ref, xs_ref, wih0_ref, b0_ref, wf_ref, b1_ref,
                   wfc_ref, bfc_ref, out_ref):
    """Two-layer LSTM recurrence (wavefront) + final FC, fully VMEM-resident."""
    B = out_ref.shape[0]
    H = wfc_ref.shape[0]
    TB = xa_ref.shape[0]
    T = TB // B
    f32 = jnp.float32

    # ---- Layer-0 input projection for the whole sequence (off the serial
    # chain): one-hot over 8 padded classes (actions 0..3, seq-flag+4 -> 4..5),
    # then a single (T*B,8)@(8,4H) matmul.  b0 (= b_ih0 + b_hh0) folded in.
    iota = jax.lax.broadcasted_iota(jnp.int32, (TB, 8), 1)
    onehot = ((iota == xa_ref[...]).astype(f32)
              + (iota == (xs_ref[...] + 4)).astype(f32))             # (T*B, 8)
    xproj = (jnp.dot(onehot, wih0_ref[...], preferred_element_type=f32)
             + b0_ref[...])                                          # (T*B, 4H)

    # Hoist loop-invariant weights/biases out of the unrolled loop.
    wf = wf_ref[...]                                                 # (2H, 8H)
    b1 = b1_ref[...]                                                 # (1, 4H)

    def gate_update(gates, c):
        # PyTorch gate order i, f, g, o.  The g-gate pre-activation columns
        # were pre-scaled by 2 in the wrapper, so tanh(x_g) = 2*sigmoid(2*x_g)-1
        # comes out of the single full-width sigmoid pass.
        sg = jax.nn.sigmoid(gates)
        i = sg[:, 0 * H:1 * H]
        f = sg[:, 1 * H:2 * H]
        g = 2.0 * sg[:, 2 * H:3 * H] - 1.0
        o = sg[:, 3 * H:4 * H]
        c_new = f * c + i * g
        h_new = o * jnp.tanh(c_new)
        return h_new, c_new

    zeros = jnp.zeros((B, H), f32)   # matches torch.zeros(...) hidden init
    c0 = zeros
    h1 = zeros
    c1 = zeros

    # Wavefront prologue: layer-0 step 0 (h0(-1) = 0, so no recurrent term).
    h0, c0 = gate_update(xproj[0:B, :], c0)

    # Wavefront steady state, fully unrolled (T small & static).  One fused
    # dot per step: [h0(t), h1(t-1)] @ [[Whh0|Wih1],[0|Whh1]] -> cols 0:4H are
    # layer-0's recurrent term for t+1, cols 4H:8H are layer-1's term for t.
    # The two gate updates are independent and can overlap.
    for t in range(T):
        xh = jnp.concatenate([h0, h1], axis=-1)                      # (B, 2H)
        fused = jnp.dot(xh, wf, preferred_element_type=f32)          # (B, 8H)
        # Layer 1, step t.
        h1, c1 = gate_update(fused[:, 4 * H:8 * H] + b1, c1)
        # Layer 0, step t+1 (skipped after the last step).
        if t + 1 < T:
            h0, c0 = gate_update(
                xproj[(t + 1) * B:(t + 2) * B, :] + fused[:, 0:4 * H], c0)

    # fc1 on the last timestep's top-layer hidden state; lane-dense 128-wide
    # output (wrapper slices [:, :3]).
    out_ref[...] = (jnp.dot(h1, wfc_ref[...], preferred_element_type=f32)
                    + bfc_ref[...])


def lstmdqn_forward(x, x_seq, params):
    B, T = x.shape
    H = params["whh0"].shape[0]
    f32 = jnp.float32

    # Scale factor for the g-gate column block (enables tanh-via-sigmoid).
    gscale = jnp.ones((4 * H,), f32).at[2 * H:3 * H].set(2.0)

    # Layer-0 input weights: pad 6 -> 8 classes (rows 6,7 unused), g cols x2.
    wih0 = jnp.zeros((8, 4 * H), f32).at[:6, :].set(params["wih0"]) * gscale
    b0 = params["b0"].astype(f32) * gscale                           # (1, 4H)

    # Fused wavefront RHS [[Whh0 | Wih1], [0 | Whh1]], g cols of both halves x2.
    top = jnp.concatenate([params["whh0"], params["wih1"]], axis=1)  # (H, 8H)
    bot = jnp.concatenate([jnp.zeros((H, 4 * H), f32), params["whh1"]], axis=1)
    w_fused = (jnp.concatenate([top, bot], axis=0)
               * jnp.concatenate([gscale, gscale]))                  # (2H, 8H)
    b1 = params["b1"].astype(f32) * gscale                           # (1, 4H)

    # Lane-dense FC: pad the 3 output columns to 128.
    wfc = jnp.zeros((H, 128), f32).at[:, :3].set(params["wfc"])
    bfc = jnp.zeros((1, 128), f32).at[:, :3].set(params["bfc"])

    # Time-major flattened indices (row r = (t = r // B, b = r % B)).
    xa = x.T.reshape(T * B, 1).astype(jnp.int32)
    xs = x_seq.T.reshape(T * B, 1).astype(jnp.int32)

    args = (xa, xs, wih0, b0, w_fused, b1, wfc, bfc)

    out_full = pl.pallas_call(
        lstmdqn_kernel,
        out_shape=jax.ShapeDtypeStruct((B, 128), jnp.float32),
        in_specs=[pl.BlockSpec(memory_space=pltpu.MemorySpace.VMEM)] * len(args),
        out_specs=pl.BlockSpec(memory_space=pltpu.MemorySpace.VMEM),
    )(*args)
    return out_full[:, :3]


def init_params(key, hidden_dim):
    """Deterministic init mirroring PyTorch defaults: U(-1/sqrt(H), 1/sqrt(H))."""
    H = hidden_dim
    k = 1.0 / jnp.sqrt(jnp.float32(H))
    keys = jax.random.split(key, 10)

    def u(kk, shape):
        return jax.random.uniform(kk, shape, jnp.float32, -k, k)

    # layer 0: input size 6 ; layer 1: input size H. Stored transposed.
    wih0 = u(keys[0], (6, 4 * H))
    whh0 = u(keys[1], (H, 4 * H))
    b0 = (u(keys[2], (4 * H,)) + u(keys[3], (4 * H,)))[None, :]   # b_ih + b_hh
    wih1 = u(keys[4], (H, 4 * H))
    whh1 = u(keys[5], (H, 4 * H))
    b1 = (u(keys[6], (4 * H,)) + u(keys[7], (4 * H,)))[None, :]
    wfc = u(keys[8], (H, 3))
    bfc = u(keys[9], (3,))[None, :]
    return dict(wih0=wih0, whh0=whh0, b0=b0,
                wih1=wih1, whh1=whh1, b1=b1,
                wfc=wfc, bfc=bfc)


def reference_forward(x, x_seq, params):
    """Plain-JAX reference of the same semantics (for verification)."""
    B, T = x.shape
    H = params["whh0"].shape[0]
    oh = jnp.concatenate([jax.nn.one_hot(x, 4, dtype=jnp.float32),
                          jax.nn.one_hot(x_seq, 2, dtype=jnp.float32)], axis=-1)
    h0 = jnp.zeros((B, H), jnp.float32)
    c0 = jnp.zeros((B, H), jnp.float32)
    h1 = jnp.zeros((B, H), jnp.float32)
    c1 = jnp.zeros((B, H), jnp.float32)

    def cell(xt, h, c, wih, whh, b):
        g = xt @ wih + h @ whh + b
        i = jax.nn.sigmoid(g[:, :H])
        f = jax.nn.sigmoid(g[:, H:2 * H])
        gg = jnp.tanh(g[:, 2 * H:3 * H])
        o = jax.nn.sigmoid(g[:, 3 * H:])
        c = f * c + i * gg
        h = o * jnp.tanh(c)
        return h, c

    for t in range(T):
        xt = oh[:, t, :]
        h0, c0 = cell(xt, h0, c0, params["wih0"], params["whh0"], params["b0"])
        h1, c1 = cell(h0, h1, c1, params["wih1"], params["whh1"], params["b1"])
    return h1 @ params["wfc"] + params["bfc"]


if __name__ == "__main__":
    key = jax.random.PRNGKey(0)
    k_p, k_x, k_s = jax.random.split(key, 3)

    B, T, H = 2, 8, 32
    params = init_params(k_p, H)
    x = jax.random.randint(k_x, (B, T), 0, 4, dtype=jnp.int32)      # actions in [0,4)
    x_seq = jax.random.randint(k_s, (B, T), 0, 2, dtype=jnp.int32)  # binary flags

    fwd = jax.jit(lstmdqn_forward)
    out = fwd(x, x_seq, params)
    out = jax.block_until_ready(out)

    ref = reference_forward(x, x_seq, params)
    assert out.shape == (B, 3)
    assert jnp.allclose(out, ref, rtol=1e-4, atol=1e-5)

    print("KERNEL_OK")
</pallas_src>

<mosaic_0001>
module attributes {stable_mosaic.version = 11 : i64} {
  func.func @lstmdqn_kernel(%arg0: memref<16x1xi32, #tpu.memory_space<vmem>>, %arg1: memref<16x1xi32, #tpu.memory_space<vmem>>, %arg2: memref<8x128xf32, #tpu.memory_space<vmem>>, %arg3: memref<1x128xf32, #tpu.memory_space<vmem>>, %arg4: memref<64x256xf32, #tpu.memory_space<vmem>>, %arg5: memref<1x128xf32, #tpu.memory_space<vmem>>, %arg6: memref<32x128xf32, #tpu.memory_space<vmem>>, %arg7: memref<1x128xf32, #tpu.memory_space<vmem>>, %arg8: memref<2x128xf32, #tpu.memory_space<vmem>>) attributes {dimension_semantics = [], scalar_prefetch = 0 : i64, scratch_operands = 0 : i64, tpu.core_type = #tpu.core_type<tc>} {
    %0 = tpu.iota {dimensions = array<i32: 1>} : vector<16x8xi32>
    %c0 = arith.constant 0 : index
    %c0_0 = arith.constant 0 : index
    %1 = vector.load %arg0[%c0, %c0_0] : memref<16x1xi32, #tpu.memory_space<vmem>>, vector<16x1xi32>
    %2 = vector.broadcast %1 : vector<16x1xi32> to vector<16x8xi32>
    %3 = arith.cmpi eq, %0, %2 : vector<16x8xi32>
    %4 = arith.extui %3 : vector<16x8xi1> to vector<16x8xi32>
    %5 = arith.sitofp %4 : vector<16x8xi32> to vector<16x8xf32>
    %c0_1 = arith.constant 0 : index
    %c0_2 = arith.constant 0 : index
    %6 = vector.load %arg1[%c0_1, %c0_2] : memref<16x1xi32, #tpu.memory_space<vmem>>, vector<16x1xi32>
    %c4_i32 = arith.constant 4 : i32
    %7 = vector.broadcast %c4_i32 : i32 to vector<16x1xi32>
    %8 = arith.addi %6, %7 : vector<16x1xi32>
    %9 = vector.broadcast %8 : vector<16x1xi32> to vector<16x8xi32>
    %10 = arith.cmpi eq, %0, %9 : vector<16x8xi32>
    %11 = arith.extui %10 : vector<16x8xi1> to vector<16x8xi32>
    %12 = arith.sitofp %11 : vector<16x8xi32> to vector<16x8xf32>
    %13 = arith.addf %5, %12 : vector<16x8xf32>
    %c0_3 = arith.constant 0 : index
    %c0_4 = arith.constant 0 : index
    %14 = vector.load %arg2[%c0_3, %c0_4] : memref<8x128xf32, #tpu.memory_space<vmem>>, vector<8x128xf32>
    %cst = arith.constant dense<0.000000e+00> : vector<16x128xf32>
    %15 = tpu.matmul %13, %14, %cst {dimension_numbers = #tpu.dot_dimension_numbers<[1], [0], [0], [1], [0, 0, 1, 1], [], []>} : vector<16x8xf32>, vector<8x128xf32>, vector<16x128xf32> -> vector<16x128xf32>
    %c0_5 = arith.constant 0 : index
    %c0_6 = arith.constant 0 : index
    %16 = vector.load %arg3[%c0_5, %c0_6] : memref<1x128xf32, #tpu.memory_space<vmem>>, vector<1x128xf32>
    %17 = vector.broadcast %16 : vector<1x128xf32> to vector<16x128xf32>
    %18 = arith.addf %15, %17 : vector<16x128xf32>
    %c0_7 = arith.constant 0 : index
    %c0_8 = arith.constant 0 : index
    %19 = vector.load %arg4[%c0_7, %c0_8] : memref<64x256xf32, #tpu.memory_space<vmem>>, vector<64x256xf32>
    %c0_9 = arith.constant 0 : index
    %c0_10 = arith.constant 0 : index
    %20 = vector.load %arg5[%c0_9, %c0_10] : memref<1x128xf32, #tpu.memory_space<vmem>>, vector<1x128xf32>
    %cst_11 = arith.constant 0.000000e+00 : f32
    %21 = vector.broadcast %cst_11 : f32 to vector<2x32xf32>
    %22 = vector.extract_strided_slice %18 {offsets = [0, 0], sizes = [2, 128], strides = [1, 1]} : vector<16x128xf32> to vector<2x128xf32>
    %23 = arith.negf %22 : vector<2x128xf32>
    %24 = math.exp %23 : vector<2x128xf32>
    %cst_12 = arith.constant 1.000000e+00 : f32
    %25 = vector.broadcast %cst_12 : f32 to vector<2x128xf32>
    %26 = arith.addf %25, %24 : vector<2x128xf32>
    %27 = arith.divf %25, %26 : vector<2x128xf32>
    %28 = vector.extract_strided_slice %27 {offsets = [0, 0], sizes = [2, 32], strides = [1, 1]} : vector<2x128xf32> to vector<2x32xf32>
    %29 = vector.extract_strided_slice %27 {offsets = [0, 32], sizes = [2, 32], strides = [1, 1]} : vector<2x128xf32> to vector<2x32xf32>
    %30 = vector.extract_strided_slice %27 {offsets = [0, 64], sizes = [2, 32], strides = [1, 1]} : vector<2x128xf32> to vector<2x32xf32>
    %cst_13 = arith.constant 2.000000e+00 : f32
    %31 = vector.broadcast %cst_13 : f32 to vector<2x32xf32>
    %32 = arith.mulf %31, %30 : vector<2x32xf32>
    %cst_14 = arith.constant 1.000000e+00 : f32
    %33 = vector.broadcast %cst_14 : f32 to vector<2x32xf32>
    %34 = arith.subf %32, %33 : vector<2x32xf32>
    %35 = vector.extract_strided_slice %27 {offsets = [0, 96], sizes = [2, 32], strides = [1, 1]} : vector<2x128xf32> to vector<2x32xf32>
    %36 = arith.mulf %29, %21 : vector<2x32xf32>
    %37 = arith.mulf %28, %34 : vector<2x32xf32>
    %38 = arith.addf %36, %37 : vector<2x32xf32>
    %39 = math.tanh %38 : vector<2x32xf32>
    %40 = arith.mulf %35, %39 : vector<2x32xf32>
    %41 = tpu.concatenate %40, %21 in 1 : vector<2x32xf32>, vector<2x32xf32> -> vector<2x64xf32>
    %cst_15 = arith.constant dense<0.000000e+00> : vector<2x256xf32>
    %42 = tpu.matmul %41, %19, %cst_15 {dimension_numbers = #tpu.dot_dimension_numbers<[1], [0], [0], [1], [0, 0, 1, 1], [], []>} : vector<2x64xf32>, vector<64x256xf32>, vector<2x256xf32> -> vector<2x256xf32>
    %43 = vector.extract_strided_slice %42 {offsets = [0, 128], sizes = [2, 128], strides = [1, 1]} : vector<2x256xf32> to vector<2x128xf32>
    %44 = vector.broadcast %20 : vector<1x128xf32> to vector<2x128xf32>
    %45 = arith.addf %43, %44 : vector<2x128xf32>
    %46 = arith.negf %45 : vector<2x128xf32>
    %47 = math.exp %46 : vector<2x128xf32>
    %cst_16 = arith.constant 1.000000e+00 : f32
    %48 = vector.broadcast %cst_16 : f32 to vector<2x128xf32>
    %49 = arith.addf %48, %47 : vector<2x128xf32>
    %50 = arith.divf %48, %49 : vector<2x128xf32>
    %51 = vector.extract_strided_slice %50 {offsets = [0, 0], sizes = [2, 32], strides = [1, 1]} : vector<2x128xf32> to vector<2x32xf32>
    %52 = vector.extract_strided_slice %50 {offsets = [0, 32], sizes = [2, 32], strides = [1, 1]} : vector<2x128xf32> to vector<2x32xf32>
    %53 = vector.extract_strided_slice %50 {offsets = [0, 64], sizes = [2, 32], strides = [1, 1]} : vector<2x128xf32> to vector<2x32xf32>
    %cst_17 = arith.constant 2.000000e+00 : f32
    %54 = vector.broadcast %cst_17 : f32 to vector<2x32xf32>
    %55 = arith.mulf %54, %53 : vector<2x32xf32>
    %cst_18 = arith.constant 1.000000e+00 : f32
    %56 = vector.broadcast %cst_18 : f32 to vector<2x32xf32>
    %57 = arith.subf %55, %56 : vector<2x32xf32>
    %58 = vector.extract_strided_slice %50 {offsets = [0, 96], sizes = [2, 32], strides = [1, 1]} : vector<2x128xf32> to vector<2x32xf32>
    %59 = arith.mulf %52, %21 : vector<2x32xf32>
    %60 = arith.mulf %51, %57 : vector<2x32xf32>
    %61 = arith.addf %59, %60 : vector<2x32xf32>
    %62 = math.tanh %61 : vector<2x32xf32>
    %63 = arith.mulf %58, %62 : vector<2x32xf32>
    %64 = vector.extract_strided_slice %18 {offsets = [2, 0], sizes = [2, 128], strides = [1, 1]} : vector<16x128xf32> to vector<2x128xf32>
    %65 = vector.extract_strided_slice %42 {offsets = [0, 0], sizes = [2, 128], strides = [1, 1]} : vector<2x256xf32> to vector<2x128xf32>
    %66 = arith.addf %64, %65 : vector<2x128xf32>
    %67 = arith.negf %66 : vector<2x128xf32>
    %68 = math.exp %67 : vector<2x128xf32>
    %cst_19 = arith.constant 1.000000e+00 : f32
    %69 = vector.broadcast %cst_19 : f32 to vector<2x128xf32>
    %70 = arith.addf %69, %68 : vector<2x128xf32>
    %71 = arith.divf %69, %70 : vector<2x128xf32>
    %72 = vector.extract_strided_slice %71 {offsets = [0, 0], sizes = [2, 32], strides = [1, 1]} : vector<2x128xf32> to vector<2x32xf32>
    %73 = vector.extract_strided_slice %71 {offsets = [0, 32], sizes = [2, 32], strides = [1, 1]} : vector<2x128xf32> to vector<2x32xf32>
    %74 = vector.extract_strided_slice %71 {offsets = [0, 64], sizes = [2, 32], strides = [1, 1]} : vector<2x128xf32> to vector<2x32xf32>
    %cst_20 = arith.constant 2.000000e+00 : f32
    %75 = vector.broadcast %cst_20 : f32 to vector<2x32xf32>
    %76 = arith.mulf %75, %74 : vector<2x32xf32>
    %cst_21 = arith.constant 1.000000e+00 : f32
    %77 = vector.broadcast %cst_21 : f32 to vector<2x32xf32>
    %78 = arith.subf %76, %77 : vector<2x32xf32>
    %79 = vector.extract_strided_slice %71 {offsets = [0, 96], sizes = [2, 32], strides = [1, 1]} : vector<2x128xf32> to vector<2x32xf32>
    %80 = arith.mulf %73, %38 : vector<2x32xf32>
    %81 = arith.mulf %72, %78 : vector<2x32xf32>
    %82 = arith.addf %80, %81 : vector<2x32xf32>
    %83 = math.tanh %82 : vector<2x32xf32>
    %84 = arith.mulf %79, %83 : vector<2x32xf32>
    %85 = tpu.concatenate %84, %63 in 1 : vector<2x32xf32>, vector<2x32xf32> -> vector<2x64xf32>
    %cst_22 = arith.constant dense<0.000000e+00> : vector<2x256xf32>
    %86 = tpu.matmul %85, %19, %cst_22 {dimension_numbers = #tpu.dot_dimension_numbers<[1], [0], [0], [1], [0, 0, 1, 1], [], []>} : vector<2x64xf32>, vector<64x256xf32>, vector<2x256xf32> -> vector<2x256xf32>
    %87 = vector.extract_strided_slice %86 {offsets = [0, 128], sizes = [2, 128], strides = [1, 1]} : vector<2x256xf32> to vector<2x128xf32>
    %88 = vector.broadcast %20 : vector<1x128xf32> to vector<2x128xf32>
    %89 = arith.addf %87, %88 : vector<2x128xf32>
    %90 = arith.negf %89 : vector<2x128xf32>
    %91 = math.exp %90 : vector<2x128xf32>
    %cst_23 = arith.constant 1.000000e+00 : f32
    %92 = vector.broadcast %cst_23 : f32 to vector<2x128xf32>
    %93 = arith.addf %92, %91 : vector<2x128xf32>
    %94 = arith.divf %92, %93 : vector<2x128xf32>
    %95 = vector.extract_strided_slice %94 {offsets = [0, 0], sizes = [2, 32], strides = [1, 1]} : vector<2x128xf32> to vector<2x32xf32>
    %96 = vector.extract_strided_slice %94 {offsets = [0, 32], sizes = [2, 32], strides = [1, 1]} : vector<2x128xf32> to vector<2x32xf32>
    %97 = vector.extract_strided_slice %94 {offsets = [0, 64], sizes = [2, 32], strides = [1, 1]} : vector<2x128xf32> to vector<2x32xf32>
    %cst_24 = arith.constant 2.000000e+00 : f32
    %98 = vector.broadcast %cst_24 : f32 to vector<2x32xf32>
    %99 = arith.mulf %98, %97 : vector<2x32xf32>
    %cst_25 = arith.constant 1.000000e+00 : f32
    %100 = vector.broadcast %cst_25 : f32 to vector<2x32xf32>
    %101 = arith.subf %99, %100 : vector<2x32xf32>
    %102 = vector.extract_strided_slice %94 {offsets = [0, 96], sizes = [2, 32], strides = [1, 1]} : vector<2x128xf32> to vector<2x32xf32>
    %103 = arith.mulf %96, %61 : vector<2x32xf32>
    %104 = arith.mulf %95, %101 : vector<2x32xf32>
    %105 = arith.addf %103, %104 : vector<2x32xf32>
    %106 = math.tanh %105 : vector<2x32xf32>
    %107 = arith.mulf %102, %106 : vector<2x32xf32>
    %108 = vector.extract_strided_slice %18 {offsets = [4, 0], sizes = [2, 128], strides = [1, 1]} : vector<16x128xf32> to vector<2x128xf32>
    %109 = vector.extract_strided_slice %86 {offsets = [0, 0], sizes = [2, 128], strides = [1, 1]} : vector<2x256xf32> to vector<2x128xf32>
    %110 = arith.addf %108, %109 : vector<2x128xf32>
    %111 = arith.negf %110 : vector<2x128xf32>
    %112 = math.exp %111 : vector<2x128xf32>
    %cst_26 = arith.constant 1.000000e+00 : f32
    %113 = vector.broadcast %cst_26 : f32 to vector<2x128xf32>
    %114 = arith.addf %113, %112 : vector<2x128xf32>
    %115 = arith.divf %113, %114 : vector<2x128xf32>
    %116 = vector.extract_strided_slice %115 {offsets = [0, 0], sizes = [2, 32], strides = [1, 1]} : vector<2x128xf32> to vector<2x32xf32>
    %117 = vector.extract_strided_slice %115 {offsets = [0, 32], sizes = [2, 32], strides = [1, 1]} : vector<2x128xf32> to vector<2x32xf32>
    %118 = vector.extract_strided_slice %115 {offsets = [0, 64], sizes = [2, 32], strides = [1, 1]} : vector<2x128xf32> to vector<2x32xf32>
    %cst_27 = arith.constant 2.000000e+00 : f32
    %119 = vector.broadcast %cst_27 : f32 to vector<2x32xf32>
    %120 = arith.mulf %119, %118 : vector<2x32xf32>
    %cst_28 = arith.constant 1.000000e+00 : f32
    %121 = vector.broadcast %cst_28 : f32 to vector<2x32xf32>
    %122 = arith.subf %120, %121 : vector<2x32xf32>
    %123 = vector.extract_strided_slice %115 {offsets = [0, 96], sizes = [2, 32], strides = [1, 1]} : vector<2x128xf32> to vector<2x32xf32>
    %124 = arith.mulf %117, %82 : vector<2x32xf32>
    %125 = arith.mulf %116, %122 : vector<2x32xf32>
    %126 = arith.addf %124, %125 : vector<2x32xf32>
    %127 = math.tanh %126 : vector<2x32xf32>
    %128 = arith.mulf %123, %127 : vector<2x32xf32>
    %129 = tpu.concatenate %128, %107 in 1 : vector<2x32xf32>, vector<2x32xf32> -> vector<2x64xf32>
    %cst_29 = arith.constant dense<0.000000e+00> : vector<2x256xf32>
    %130 = tpu.matmul %129, %19, %cst_29 {dimension_numbers = #tpu.dot_dimension_numbers<[1], [0], [0], [1], [0, 0, 1, 1], [], []>} : vector<2x64xf32>, vector<64x256xf32>, vector<2x256xf32> -> vector<2x256xf32>
    %131 = vector.extract_strided_slice %130 {offsets = [0, 128], sizes = [2, 128], strides = [1, 1]} : vector<2x256xf32> to vector<2x128xf32>
    %132 = vector.broadcast %20 : vector<1x128xf32> to vector<2x128xf32>
    %133 = arith.addf %131, %132 : vector<2x128xf32>
    %134 = arith.negf %133 : vector<2x128xf32>
    %135 = math.exp %134 : vector<2x128xf32>
    %cst_30 = arith.constant 1.000000e+00 : f32
    %136 = vector.broadcast %cst_30 : f32 to vector<2x128xf32>
    %137 = arith.addf %136, %135 : vector<2x128xf32>
    %138 = arith.divf %136, %137 : vector<2x128xf32>
    %139 = vector.extract_strided_slice %138 {offsets = [0, 0], sizes = [2, 32], strides = [1, 1]} : vector<2x128xf32> to vector<2x32xf32>
    %140 = vector.extract_strided_slice %138 {offsets = [0, 32], sizes = [2, 32], strides = [1, 1]} : vector<2x128xf32> to vector<2x32xf32>
    %141 = vector.extract_strided_slice %138 {offsets = [0, 64], sizes = [2, 32], strides = [1, 1]} : vector<2x128xf32> to vector<2x32xf32>
    %cst_31 = arith.constant 2.000000e+00 : f32
    %142 = vector.broadcast %cst_31 : f32 to vector<2x32xf32>
    %143 = arith.mulf %142, %141 : vector<2x32xf32>
    %cst_32 = arith.constant 1.000000e+00 : f32
    %144 = vector.broadcast %cst_32 : f32 to vector<2x32xf32>
    %145 = arith.subf %143, %144 : vector<2x32xf32>
    %146 = vector.extract_strided_slice %138 {offsets = [0, 96], sizes = [2, 32], strides = [1, 1]} : vector<2x128xf32> to vector<2x32xf32>
    %147 = arith.mulf %140, %105 : vector<2x32xf32>
    %148 = arith.mulf %139, %145 : vector<2x32xf32>
    %149 = arith.addf %147, %148 : vector<2x32xf32>
    %150 = math.tanh %149 : vector<2x32xf32>
    %151 = arith.mulf %146, %150 : vector<2x32xf32>
    %152 = vector.extract_strided_slice %18 {offsets = [6, 0], sizes = [2, 128], strides = [1, 1]} : vector<16x128xf32> to vector<2x128xf32>
    %153 = vector.extract_strided_slice %130 {offsets = [0, 0], sizes = [2, 128], strides = [1, 1]} : vector<2x256xf32> to vector<2x128xf32>
    %154 = arith.addf %152, %153 : vector<2x128xf32>
    %155 = arith.negf %154 : vector<2x128xf32>
    %156 = math.exp %155 : vector<2x128xf32>
    %cst_33 = arith.constant 1.000000e+00 : f32
    %157 = vector.broadcast %cst_33 : f32 to vector<2x128xf32>
    %158 = arith.addf %157, %156 : vector<2x128xf32>
    %159 = arith.divf %157, %158 : vector<2x128xf32>
    %160 = vector.extract_strided_slice %159 {offsets = [0, 0], sizes = [2, 32], strides = [1, 1]} : vector<2x128xf32> to vector<2x32xf32>
    %161 = vector.extract_strided_slice %159 {offsets = [0, 32], sizes = [2, 32], strides = [1, 1]} : vector<2x128xf32> to vector<2x32xf32>
    %162 = vector.extract_strided_slice %159 {offsets = [0, 64], sizes = [2, 32], strides = [1, 1]} : vector<2x128xf32> to vector<2x32xf32>
    %cst_34 = arith.constant 2.000000e+00 : f32
    %163 = vector.broadcast %cst_34 : f32 to vector<2x32xf32>
    %164 = arith.mulf %163, %162 : vector<2x32xf32>
    %cst_35 = arith.constant 1.000000e+00 : f32
    %165 = vector.broadcast %cst_35 : f32 to vector<2x32xf32>
    %166 = arith.subf %164, %165 : vector<2x32xf32>
    %167 = vector.extract_strided_slice %159 {offsets = [0, 96], sizes = [2, 32], strides = [1, 1]} : vector<2x128xf32> to vector<2x32xf32>
    %168 = arith.mulf %161, %126 : vector<2x32xf32>
    %169 = arith.mulf %160, %166 : vector<2x32xf32>
    %170 = arith.addf %168, %169 : vector<2x32xf32>
    %171 = math.tanh %170 : vector<2x32xf32>
    %172 = arith.mulf %167, %171 : vector<2x32xf32>
    %173 = tpu.concatenate %172, %151 in 1 : vector<2x32xf32>, vector<2x32xf32> -> vector<2x64xf32>
    %cst_36 = arith.constant dense<0.000000e+00> : vector<2x256xf32>
    %174 = tpu.matmul %173, %19, %cst_36 {dimension_numbers = #tpu.dot_dimension_numbers<[1], [0], [0], [1], [0, 0, 1, 1], [], []>} : vector<2x64xf32>, vector<64x256xf32>, vector<2x256xf32> -> vector<2x256xf32>
    %175 = vector.extract_strided_slice %174 {offsets = [0, 128], sizes = [2, 128], strides = [1, 1]} : vector<2x256xf32> to vector<2x128xf32>
    %176 = vector.broadcast %20 : vector<1x128xf32> to vector<2x128xf32>
    %177 = arith.addf %175, %176 : vector<2x128xf32>
    %178 = arith.negf %177 : vector<2x128xf32>
    %179 = math.exp %178 : vector<2x128xf32>
    %cst_37 = arith.constant 1.000000e+00 : f32
    %180 = vector.broadcast %cst_37 : f32 to vector<2x128xf32>
    %181 = arith.addf %180, %179 : vector<2x128xf32>
    %182 = arith.divf %180, %181 : vector<2x128xf32>
    %183 = vector.extract_strided_slice %182 {offsets = [0, 0], sizes = [2, 32], strides = [1, 1]} : vector<2x128xf32> to vector<2x32xf32>
    %184 = vector.extract_strided_slice %182 {offsets = [0, 32], sizes = [2, 32], strides = [1, 1]} : vector<2x128xf32> to vector<2x32xf32>
    %185 = vector.extract_strided_slice %182 {offsets = [0, 64], sizes = [2, 32], strides = [1, 1]} : vector<2x128xf32> to vector<2x32xf32>
    %cst_38 = arith.constant 2.000000e+00 : f32
    %186 = vector.broadcast %cst_38 : f32 to vector<2x32xf32>
    %187 = arith.mulf %186, %185 : vector<2x32xf32>
    %cst_39 = arith.constant 1.000000e+00 : f32
    %188 = vector.broadcast %cst_39 : f32 to vector<2x32xf32>
    %189 = arith.subf %187, %188 : vector<2x32xf32>
    %190 = vector.extract_strided_slice %182 {offsets = [0, 96], sizes = [2, 32], strides = [1, 1]} : vector<2x128xf32> to vector<2x32xf32>
    %191 = arith.mulf %184, %149 : vector<2x32xf32>
    %192 = arith.mulf %183, %189 : vector<2x32xf32>
    %193 = arith.addf %191, %192 : vector<2x32xf32>
    %194 = math.tanh %193 : vector<2x32xf32>
    %195 = arith.mulf %190, %194 : vector<2x32xf32>
    %196 = vector.extract_strided_slice %18 {offsets = [8, 0], sizes = [2, 128], strides = [1, 1]} : vector<16x128xf32> to vector<2x128xf32>
    %197 = vector.extract_strided_slice %174 {offsets = [0, 0], sizes = [2, 128], strides = [1, 1]} : vector<2x256xf32> to vector<2x128xf32>
    %198 = arith.addf %196, %197 : vector<2x128xf32>
    %199 = arith.negf %198 : vector<2x128xf32>
    %200 = math.exp %199 : vector<2x128xf32>
    %cst_40 = arith.constant 1.000000e+00 : f32
    %201 = vector.broadcast %cst_40 : f32 to vector<2x128xf32>
    %202 = arith.addf %201, %200 : vector<2x128xf32>
    %203 = arith.divf %201, %202 : vector<2x128xf32>
    %204 = vector.extract_strided_slice %203 {offsets = [0, 0], sizes = [2, 32], strides = [1, 1]} : vector<2x128xf32> to vector<2x32xf32>
    %205 = vector.extract_strided_slice %203 {offsets = [0, 32], sizes = [2, 32], strides = [1, 1]} : vector<2x128xf32> to vector<2x32xf32>
    %206 = vector.extract_strided_slice %203 {offsets = [0, 64], sizes = [2, 32], strides = [1, 1]} : vector<2x128xf32> to vector<2x32xf32>
    %cst_41 = arith.constant 2.000000e+00 : f32
    %207 = vector.broadcast %cst_41 : f32 to vector<2x32xf32>
    %208 = arith.mulf %207, %206 : vector<2x32xf32>
    %cst_42 = arith.constant 1.000000e+00 : f32
    %209 = vector.broadcast %cst_42 : f32 to vector<2x32xf32>
    %210 = arith.subf %208, %209 : vector<2x32xf32>
    %211 = vector.extract_strided_slice %203 {offsets = [0, 96], sizes = [2, 32], strides = [1, 1]} : vector<2x128xf32> to vector<2x32xf32>
    %212 = arith.mulf %205, %170 : vector<2x32xf32>
    %213 = arith.mulf %204, %210 : vector<2x32xf32>
    %214 = arith.addf %212, %213 : vector<2x32xf32>
    %215 = math.tanh %214 : vector<2x32xf32>
    %216 = arith.mulf %211, %215 : vector<2x32xf32>
    %217 = tpu.concatenate %216, %195 in 1 : vector<2x32xf32>, vector<2x32xf32> -> vector<2x64xf32>
    %cst_43 = arith.constant dense<0.000000e+00> : vector<2x256xf32>
    %218 = tpu.matmul %217, %19, %cst_43 {dimension_numbers = #tpu.dot_dimension_numbers<[1], [0], [0], [1], [0, 0, 1, 1], [], []>} : vector<2x64xf32>, vector<64x256xf32>, vector<2x256xf32> -> vector<2x256xf32>
    %219 = vector.extract_strided_slice %218 {offsets = [0, 128], sizes = [2, 128], strides = [1, 1]} : vector<2x256xf32> to vector<2x128xf32>
    %220 = vector.broadcast %20 : vector<1x128xf32> to vector<2x128xf32>
    %221 = arith.addf %219, %220 : vector<2x128xf32>
    %222 = arith.negf %221 : vector<2x128xf32>
    %223 = math.exp %222 : vector<2x128xf32>
    %cst_44 = arith.constant 1.000000e+00 : f32
    %224 = vector.broadcast %cst_44 : f32 to vector<2x128xf32>
    %225 = arith.addf %224, %223 : vector<2x128xf32>
    %226 = arith.divf %224, %225 : vector<2x128xf32>
    %227 = vector.extract_strided_slice %226 {offsets = [0, 0], sizes = [2, 32], strides = [1, 1]} : vector<2x128xf32> to vector<2x32xf32>
    %228 = vector.extract_strided_slice %226 {offsets = [0, 32], sizes = [2, 32], strides = [1, 1]} : vector<2x128xf32> to vector<2x32xf32>
    %229 = vector.extract_strided_slice %226 {offsets = [0, 64], sizes = [2, 32], strides = [1, 1]} : vector<2x128xf32> to vector<2x32xf32>
    %cst_45 = arith.constant 2.000000e+00 : f32
    %230 = vector.broadcast %cst_45 : f32 to vector<2x32xf32>
    %231 = arith.mulf %230, %229 : vector<2x32xf32>
    %cst_46 = arith.constant 1.000000e+00 : f32
    %232 = vector.broadcast %cst_46 : f32 to vector<2x32xf32>
    %233 = arith.subf %231, %232 : vector<2x32xf32>
    %234 = vector.extract_strided_slice %226 {offsets = [0, 96], sizes = [2, 32], strides = [1, 1]} : vector<2x128xf32> to vector<2x32xf32>
    %235 = arith.mulf %228, %193 : vector<2x32xf32>
    %236 = arith.mulf %227, %233 : vector<2x32xf32>
    %237 = arith.addf %235, %236 : vector<2x32xf32>
    %238 = math.tanh %237 : vector<2x32xf32>
    %239 = arith.mulf %234, %238 : vector<2x32xf32>
    %240 = vector.extract_strided_slice %18 {offsets = [10, 0], sizes = [2, 128], strides = [1, 1]} : vector<16x128xf32> to vector<2x128xf32>
    %241 = vector.extract_strided_slice %218 {offsets = [0, 0], sizes = [2, 128], strides = [1, 1]} : vector<2x256xf32> to vector<2x128xf32>
    %242 = arith.addf %240, %241 : vector<2x128xf32>
    %243 = arith.negf %242 : vector<2x128xf32>
    %244 = math.exp %243 : vector<2x128xf32>
    %cst_47 = arith.constant 1.000000e+00 : f32
    %245 = vector.broadcast %cst_47 : f32 to vector<2x128xf32>
    %246 = arith.addf %245, %244 : vector<2x128xf32>
    %247 = arith.divf %245, %246 : vector<2x128xf32>
    %248 = vector.extract_strided_slice %247 {offsets = [0, 0], sizes = [2, 32], strides = [1, 1]} : vector<2x128xf32> to vector<2x32xf32>
    %249 = vector.extract_strided_slice %247 {offsets = [0, 32], sizes = [2, 32], strides = [1, 1]} : vector<2x128xf32> to vector<2x32xf32>
    %250 = vector.extract_strided_slice %247 {offsets = [0, 64], sizes = [2, 32], strides = [1, 1]} : vector<2x128xf32> to vector<2x32xf32>
    %cst_48 = arith.constant 2.000000e+00 : f32
    %251 = vector.broadcast %cst_48 : f32 to vector<2x32xf32>
    %252 = arith.mulf %251, %250 : vector<2x32xf32>
    %cst_49 = arith.constant 1.000000e+00 : f32
    %253 = vector.broadcast %cst_49 : f32 to vector<2x32xf32>
    %254 = arith.subf %252, %253 : vector<2x32xf32>
    %255 = vector.extract_strided_slice %247 {offsets = [0, 96], sizes = [2, 32], strides = [1, 1]} : vector<2x128xf32> to vector<2x32xf32>
    %256 = arith.mulf %249, %214 : vector<2x32xf32>
    %257 = arith.mulf %248, %254 : vector<2x32xf32>
    %258 = arith.addf %256, %257 : vector<2x32xf32>
    %259 = math.tanh %258 : vector<2x32xf32>
    %260 = arith.mulf %255, %259 : vector<2x32xf32>
    %261 = tpu.concatenate %260, %239 in 1 : vector<2x32xf32>, vector<2x32xf32> -> vector<2x64xf32>
    %cst_50 = arith.constant dense<0.000000e+00> : vector<2x256xf32>
    %262 = tpu.matmul %261, %19, %cst_50 {dimension_numbers = #tpu.dot_dimension_numbers<[1], [0], [0], [1], [0, 0, 1, 1], [], []>} : vector<2x64xf32>, vector<64x256xf32>, vector<2x256xf32> -> vector<2x256xf32>
    %263 = vector.extract_strided_slice %262 {offsets = [0, 128], sizes = [2, 128], strides = [1, 1]} : vector<2x256xf32> to vector<2x128xf32>
    %264 = vector.broadcast %20 : vector<1x128xf32> to vector<2x128xf32>
    %265 = arith.addf %263, %264 : vector<2x128xf32>
    %266 = arith.negf %265 : vector<2x128xf32>
    %267 = math.exp %266 : vector<2x128xf32>
    %cst_51 = arith.constant 1.000000e+00 : f32
    %268 = vector.broadcast %cst_51 : f32 to vector<2x128xf32>
    %269 = arith.addf %268, %267 : vector<2x128xf32>
    %270 = arith.divf %268, %269 : vector<2x128xf32>
    %271 = vector.extract_strided_slice %270 {offsets = [0, 0], sizes = [2, 32], strides = [1, 1]} : vector<2x128xf32> to vector<2x32xf32>
    %272 = vector.extract_strided_slice %270 {offsets = [0, 32], sizes = [2, 32], strides = [1, 1]} : vector<2x128xf32> to vector<2x32xf32>
    %273 = vector.extract_strided_slice %270 {offsets = [0, 64], sizes = [2, 32], strides = [1, 1]} : vector<2x128xf32> to vector<2x32xf32>
    %cst_52 = arith.constant 2.000000e+00 : f32
    %274 = vector.broadcast %cst_52 : f32 to vector<2x32xf32>
    %275 = arith.mulf %274, %273 : vector<2x32xf32>
    %cst_53 = arith.constant 1.000000e+00 : f32
    %276 = vector.broadcast %cst_53 : f32 to vector<2x32xf32>
    %277 = arith.subf %275, %276 : vector<2x32xf32>
    %278 = vector.extract_strided_slice %270 {offsets = [0, 96], sizes = [2, 32], strides = [1, 1]} : vector<2x128xf32> to vector<2x32xf32>
    %279 = arith.mulf %272, %237 : vector<2x32xf32>
    %280 = arith.mulf %271, %277 : vector<2x32xf32>
    %281 = arith.addf %279, %280 : vector<2x32xf32>
    %282 = math.tanh %281 : vector<2x32xf32>
    %283 = arith.mulf %278, %282 : vector<2x32xf32>
    %284 = vector.extract_strided_slice %18 {offsets = [12, 0], sizes = [2, 128], strides = [1, 1]} : vector<16x128xf32> to vector<2x128xf32>
    %285 = vector.extract_strided_slice %262 {offsets = [0, 0], sizes = [2, 128], strides = [1, 1]} : vector<2x256xf32> to vector<2x128xf32>
    %286 = arith.addf %284, %285 : vector<2x128xf32>
    %287 = arith.negf %286 : vector<2x128xf32>
    %288 = math.exp %287 : vector<2x128xf32>
    %cst_54 = arith.constant 1.000000e+00 : f32
    %289 = vector.broadcast %cst_54 : f32 to vector<2x128xf32>
    %290 = arith.addf %289, %288 : vector<2x128xf32>
    %291 = arith.divf %289, %290 : vector<2x128xf32>
    %292 = vector.extract_strided_slice %291 {offsets = [0, 0], sizes = [2, 32], strides = [1, 1]} : vector<2x128xf32> to vector<2x32xf32>
    %293 = vector.extract_strided_slice %291 {offsets = [0, 32], sizes = [2, 32], strides = [1, 1]} : vector<2x128xf32> to vector<2x32xf32>
    %294 = vector.extract_strided_slice %291 {offsets = [0, 64], sizes = [2, 32], strides = [1, 1]} : vector<2x128xf32> to vector<2x32xf32>
    %cst_55 = arith.constant 2.000000e+00 : f32
    %295 = vector.broadcast %cst_55 : f32 to vector<2x32xf32>
    %296 = arith.mulf %295, %294 : vector<2x32xf32>
    %cst_56 = arith.constant 1.000000e+00 : f32
    %297 = vector.broadcast %cst_56 : f32 to vector<2x32xf32>
    %298 = arith.subf %296, %297 : vector<2x32xf32>
    %299 = vector.extract_strided_slice %291 {offsets = [0, 96], sizes = [2, 32], strides = [1, 1]} : vector<2x128xf32> to vector<2x32xf32>
    %300 = arith.mulf %293, %258 : vector<2x32xf32>
    %301 = arith.mulf %292, %298 : vector<2x32xf32>
    %302 = arith.addf %300, %301 : vector<2x32xf32>
    %303 = math.tanh %302 : vector<2x32xf32>
    %304 = arith.mulf %299, %303 : vector<2x32xf32>
    %305 = tpu.concatenate %304, %283 in 1 : vector<2x32xf32>, vector<2x32xf32> -> vector<2x64xf32>
    %cst_57 = arith.constant dense<0.000000e+00> : vector<2x256xf32>
    %306 = tpu.matmul %305, %19, %cst_57 {dimension_numbers = #tpu.dot_dimension_numbers<[1], [0], [0], [1], [0, 0, 1, 1], [], []>} : vector<2x64xf32>, vector<64x256xf32>, vector<2x256xf32> -> vector<2x256xf32>
    %307 = vector.extract_strided_slice %306 {offsets = [0, 128], sizes = [2, 128], strides = [1, 1]} : vector<2x256xf32> to vector<2x128xf32>
    %308 = vector.broadcast %20 : vector<1x128xf32> to vector<2x128xf32>
    %309 = arith.addf %307, %308 : vector<2x128xf32>
    %310 = arith.negf %309 : vector<2x128xf32>
    %311 = math.exp %310 : vector<2x128xf32>
    %cst_58 = arith.constant 1.000000e+00 : f32
    %312 = vector.broadcast %cst_58 : f32 to vector<2x128xf32>
    %313 = arith.addf %312, %311 : vector<2x128xf32>
    %314 = arith.divf %312, %313 : vector<2x128xf32>
    %315 = vector.extract_strided_slice %314 {offsets = [0, 0], sizes = [2, 32], strides = [1, 1]} : vector<2x128xf32> to vector<2x32xf32>
    %316 = vector.extract_strided_slice %314 {offsets = [0, 32], sizes = [2, 32], strides = [1, 1]} : vector<2x128xf32> to vector<2x32xf32>
    %317 = vector.extract_strided_slice %314 {offsets = [0, 64], sizes = [2, 32], strides = [1, 1]} : vector<2x128xf32> to vector<2x32xf32>
    %cst_59 = arith.constant 2.000000e+00 : f32
    %318 = vector.broadcast %cst_59 : f32 to vector<2x32xf32>
    %319 = arith.mulf %318, %317 : vector<2x32xf32>
    %cst_60 = arith.constant 1.000000e+00 : f32
    %320 = vector.broadcast %cst_60 : f32 to vector<2x32xf32>
    %321 = arith.subf %319, %320 : vector<2x32xf32>
    %322 = vector.extract_strided_slice %314 {offsets = [0, 96], sizes = [2, 32], strides = [1, 1]} : vector<2x128xf32> to vector<2x32xf32>
    %323 = arith.mulf %316, %281 : vector<2x32xf32>
    %324 = arith.mulf %315, %321 : vector<2x32xf32>
    %325 = arith.addf %323, %324 : vector<2x32xf32>
    %326 = math.tanh %325 : vector<2x32xf32>
    %327 = arith.mulf %322, %326 : vector<2x32xf32>
    %328 = vector.extract_strided_slice %18 {offsets = [14, 0], sizes = [2, 128], strides = [1, 1]} : vector<16x128xf32> to vector<2x128xf32>
    %329 = vector.extract_strided_slice %306 {offsets = [0, 0], sizes = [2, 128], strides = [1, 1]} : vector<2x256xf32> to vector<2x128xf32>
    %330 = arith.addf %328, %329 : vector<2x128xf32>
    %331 = arith.negf %330 : vector<2x128xf32>
    %332 = math.exp %331 : vector<2x128xf32>
    %cst_61 = arith.constant 1.000000e+00 : f32
    %333 = vector.broadcast %cst_61 : f32 to vector<2x128xf32>
    %334 = arith.addf %333, %332 : vector<2x128xf32>
    %335 = arith.divf %333, %334 : vector<2x128xf32>
    %336 = vector.extract_strided_slice %335 {offsets = [0, 0], sizes = [2, 32], strides = [1, 1]} : vector<2x128xf32> to vector<2x32xf32>
    %337 = vector.extract_strided_slice %335 {offsets = [0, 32], sizes = [2, 32], strides = [1, 1]} : vector<2x128xf32> to vector<2x32xf32>
    %338 = vector.extract_strided_slice %335 {offsets = [0, 64], sizes = [2, 32], strides = [1, 1]} : vector<2x128xf32> to vector<2x32xf32>
    %cst_62 = arith.constant 2.000000e+00 : f32
    %339 = vector.broadcast %cst_62 : f32 to vector<2x32xf32>
    %340 = arith.mulf %339, %338 : vector<2x32xf32>
    %cst_63 = arith.constant 1.000000e+00 : f32
    %341 = vector.broadcast %cst_63 : f32 to vector<2x32xf32>
    %342 = arith.subf %340, %341 : vector<2x32xf32>
    %343 = vector.extract_strided_slice %335 {offsets = [0, 96], sizes = [2, 32], strides = [1, 1]} : vector<2x128xf32> to vector<2x32xf32>
    %344 = arith.mulf %337, %302 : vector<2x32xf32>
    %345 = arith.mulf %336, %342 : vector<2x32xf32>
    %346 = arith.addf %344, %345 : vector<2x32xf32>
    %347 = math.tanh %346 : vector<2x32xf32>
    %348 = arith.mulf %343, %347 : vector<2x32xf32>
    %349 = tpu.concatenate %348, %327 in 1 : vector<2x32xf32>, vector<2x32xf32> -> vector<2x64xf32>
    %cst_64 = arith.constant dense<0.000000e+00> : vector<2x256xf32>
    %350 = tpu.matmul %349, %19, %cst_64 {dimension_numbers = #tpu.dot_dimension_numbers<[1], [0], [0], [1], [0, 0, 1, 1], [], []>} : vector<2x64xf32>, vector<64x256xf32>, vector<2x256xf32> -> vector<2x256xf32>
    %351 = vector.extract_strided_slice %350 {offsets = [0, 128], sizes = [2, 128], strides = [1, 1]} : vector<2x256xf32> to vector<2x128xf32>
    %352 = vector.broadcast %20 : vector<1x128xf32> to vector<2x128xf32>
    %353 = arith.addf %351, %352 : vector<2x128xf32>
    %354 = arith.negf %353 : vector<2x128xf32>
    %355 = math.exp %354 : vector<2x128xf32>
    %cst_65 = arith.constant 1.000000e+00 : f32
    %356 = vector.broadcast %cst_65 : f32 to vector<2x128xf32>
    %357 = arith.addf %356, %355 : vector<2x128xf32>
    %358 = arith.divf %356, %357 : vector<2x128xf32>
    %359 = vector.extract_strided_slice %358 {offsets = [0, 0], sizes = [2, 32], strides = [1, 1]} : vector<2x128xf32> to vector<2x32xf32>
    %360 = vector.extract_strided_slice %358 {offsets = [0, 32], sizes = [2, 32], strides = [1, 1]} : vector<2x128xf32> to vector<2x32xf32>
    %361 = vector.extract_strided_slice %358 {offsets = [0, 64], sizes = [2, 32], strides = [1, 1]} : vector<2x128xf32> to vector<2x32xf32>
    %cst_66 = arith.constant 2.000000e+00 : f32
    %362 = vector.broadcast %cst_66 : f32 to vector<2x32xf32>
    %363 = arith.mulf %362, %361 : vector<2x32xf32>
    %cst_67 = arith.constant 1.000000e+00 : f32
    %364 = vector.broadcast %cst_67 : f32 to vector<2x32xf32>
    %365 = arith.subf %363, %364 : vector<2x32xf32>
    %366 = vector.extract_strided_slice %358 {offsets = [0, 96], sizes = [2, 32], strides = [1, 1]} : vector<2x128xf32> to vector<2x32xf32>
    %367 = arith.mulf %360, %325 : vector<2x32xf32>
    %368 = arith.mulf %359, %365 : vector<2x32xf32>
    %369 = arith.addf %367, %368 : vector<2x32xf32>
    %370 = math.tanh %369 : vector<2x32xf32>
    %371 = arith.mulf %366, %370 : vector<2x32xf32>
    %c0_68 = arith.constant 0 : index
    %c0_69 = arith.constant 0 : index
    %372 = vector.load %arg6[%c0_68, %c0_69] : memref<32x128xf32, #tpu.memory_space<vmem>>, vector<32x128xf32>
    %cst_70 = arith.constant dense<0.000000e+00> : vector<2x128xf32>
    %373 = tpu.matmul %371, %372, %cst_70 {dimension_numbers = #tpu.dot_dimension_numbers<[1], [0], [0], [1], [0, 0, 1, 1], [], []>} : vector<2x32xf32>, vector<32x128xf32>, vector<2x128xf32> -> vector<2x128xf32>
    %c0_71 = arith.constant 0 : index
    %c0_72 = arith.constant 0 : index
    %374 = vector.load %arg7[%c0_71, %c0_72] : memref<1x128xf32, #tpu.memory_space<vmem>>, vector<1x128xf32>
    %375 = vector.broadcast %374 : vector<1x128xf32> to vector<2x128xf32>
    %376 = arith.addf %373, %375 : vector<2x128xf32>
    %c0_73 = arith.constant 0 : index
    %c0_74 = arith.constant 0 : index
    %377 = vector.load %arg8[%c0_73, %c0_74] : memref<2x128xf32, #tpu.memory_space<vmem>>, vector<2x128xf32>
    tpu.vector_store %arg8[%c0_73, %c0_74], %376 {strides = array<i32>} : memref<2x128xf32, #tpu.memory_space<vmem>>, vector<2x128xf32>,
    return
  }
}

</mosaic_0001>

<llo_original>
// kernel: lstmdqn_forward.1
$region0: #{lstmdqn_forward.1}
  #allocation0 [shape = 'u32[]', space=smem, size = 0x4, offset = 0x4, fixed_abs, tag = 'smem constant byte address 0x4 - core index']
  #allocation1 [shape = 'u32[144,128]{1,0:T(1,128)}', space=vmem, size = 0x12000, scoped, tag = 'internal scratch']
  %s0 = inlined_call_operand.vmem [shape: s32[16,1], index: 0, kind: input, shape index: {}]
  %s1 = inlined_call_operand.vmem [shape: s32[16,1], index: 1, kind: input, shape index: {}]
  %s2 = inlined_call_operand.vmem [shape: f32[8,128], index: 2, kind: input, shape index: {}]
  %s3 = inlined_call_operand.vmem [shape: f32[1,128], index: 3, kind: input, shape index: {}]
  %s4 = inlined_call_operand.vmem [shape: f32[64,256], index: 4, kind: input, shape index: {}]
  %s5 = inlined_call_operand.vmem [shape: f32[1,128], index: 5, kind: input, shape index: {}]
  %s6 = inlined_call_operand.vmem [shape: f32[32,128], index: 6, kind: input, shape index: {}]
  %s7 = inlined_call_operand.vmem [shape: f32[1,128], index: 7, kind: input, shape index: {}]
  %s8 = inlined_call_operand.hbm [shape: f32[2,128], index: 8, kind: output, shape index: {}]
  %s9 = sld [smem:[#allocation0]]
  $region42: #{lstmdqn_forward.1} parent=0
    _
  %s11 = ssub.s32 1, %s9
  %s12 = scalar_select 0, %s11, %s9
  $region1: #{lstmdqn_forward.1} parent=0
    #allocation2 [shape = 'u8[1024]{0}', space=vmem, size = 0x400, scoped, tag = 'output window, operand 0, single buffered']
    #allocation3 [shape = 's32[1]{0}', space=sflag, size = 0x4, scoped, tag = 'scoped memory for lstmdqn_forward.1']
    %13 = vsyncpa [#allocation3], 0
    // Predicated region
    $region2: #{lstmdqn_forward.1} parent=1 // pred_check
      _
    $region3: #{lstmdqn_forward.1} parent=1 // pred_check_branch
      %15 = sbr.rel (0) target = $region5
    $region4: #{lstmdqn_forward.1} parent=1 // pred_region
      _
    $region5: #{lstmdqn_forward.1} parent=1 // pred_fallthru
      _
    // Predicated region
    $region6: #{lstmdqn_forward.1} parent=1 // pred_check
      _
    $region7: #{lstmdqn_forward.1} parent=1 // pred_check_branch
      %17 = sbr.rel (0) target = $region9
    $region8: #{lstmdqn_forward.1} parent=1 // pred_region
      _
    $region9: #{lstmdqn_forward.1} parent=1 // pred_fallthru
      _
    // Predicated region
    $region10: #{lstmdqn_forward.1} parent=1 // pred_check
      _
    $region11: #{lstmdqn_forward.1} parent=1 // pred_check_branch
      %19 = sbr.rel (0) target = $region13
    $region12: #{lstmdqn_forward.1} parent=1 // pred_region
      _
    $region13: #{lstmdqn_forward.1} parent=1 // pred_fallthru
      _
    // Predicated region
    $region14: #{lstmdqn_forward.1} parent=1 // pred_check
      _
    $region15: #{lstmdqn_forward.1} parent=1 // pred_check_branch
      %21 = sbr.rel (0) target = $region17
    $region16: #{lstmdqn_forward.1} parent=1 // pred_region
      _
    $region17: #{lstmdqn_forward.1} parent=1 // pred_fallthru
      _
    // Predicated region
    $region18: #{lstmdqn_forward.1} parent=1 // pred_check
      _
    $region19: #{lstmdqn_forward.1} parent=1 // pred_check_branch
      %23 = sbr.rel (0) target = $region21
    $region20: #{lstmdqn_forward.1} parent=1 // pred_region
      _
    $region21: #{lstmdqn_forward.1} parent=1 // pred_fallthru
      _
    // Predicated region
    $region22: #{lstmdqn_forward.1} parent=1 // pred_check
      _
    $region23: #{lstmdqn_forward.1} parent=1 // pred_check_branch
      %25 = sbr.rel (0) target = $region25
    $region24: #{lstmdqn_forward.1} parent=1 // pred_region
      _
    $region25: #{lstmdqn_forward.1} parent=1 // pred_fallthru
      _
    // Predicated region
    $region26: #{lstmdqn_forward.1} parent=1 // pred_check
      _
    $region27: #{lstmdqn_forward.1} parent=1 // pred_check_branch
      %27 = sbr.rel (0) target = $region29
    $region28: #{lstmdqn_forward.1} parent=1 // pred_region
      _
    $region29: #{lstmdqn_forward.1} parent=1 // pred_fallthru
      _
    // Predicated region
    $region30: #{lstmdqn_forward.1} parent=1 // pred_check
      _
    $region31: #{lstmdqn_forward.1} parent=1 // pred_check_branch
      %29 = sbr.rel (0) target = $region33
    $region32: #{lstmdqn_forward.1} parent=1 // pred_region
      _
    $region33: #{lstmdqn_forward.1} parent=1 // pred_fallthru
      _
    %v30 = vlaneseq
    %v31 = vand.u32 %v30, 127
    %v32 = vld [vmem:[%s0] sm:$0xff]
    %v33 = vld [vmem:[%s0 + $0x8] sm:$0xff]
    %34 = vset.pattern.permute.xlu0 0
    %35 = vperm.xlu0 %34, %v32
    %v36 = vpop.permute.xlu0 %35
    %37 = vset.pattern.permute.xlu0 0
    %38 = vperm.xlu0 %37, %v33
    %v39 = vpop.permute.xlu0 %38
    %vm40 = vcmp.eq.s32.totalorder %v31, %v36
    %vm41 = vcmp.eq.s32.totalorder %v31, %v39
    %v42 = vsel %vm40, 1, 0
    %v43 = vsel %vm41, 1, 0
    %v44 = vcvt.s32.f32 %v42
    %v45 = vcvt.s32.f32 %v43
    %v46 = vld [vmem:[%s1] sm:$0xff]
    %v47 = vld [vmem:[%s1 + $0x8] sm:$0xff]
    %v48 = vadd.s32 %v46, 4
    %v49 = vadd.s32 %v47, 4
    %50 = vset.pattern.permute.xlu0 0
    %51 = vperm.xlu0 %50, %v48
    %v52 = vpop.permute.xlu0 %51
    %53 = vset.pattern.permute.xlu0 0
    %54 = vperm.xlu0 %53, %v49
    %v55 = vpop.permute.xlu0 %54
    %vm56 = vcmp.eq.s32.totalorder %v31, %v52
    %vm57 = vcmp.eq.s32.totalorder %v31, %v55
    %v58 = vsel %vm56, 1, 0
    %v59 = vsel %vm57, 1, 0
    %v60 = vcvt.s32.f32 %v58
    %v61 = vcvt.s32.f32 %v59
    %v62 = vadd.f32 %v44, %v60
    %v63 = vadd.f32 %v45, %v61
    %v64 = vld [vmem:[%s2] sm:$0xff]
    %v65 = vld [vmem:[%s3] sm:$0x1]
    %v67 = vlaneseq
    %v68 = vshrl.u32 %v67, 7
    %v69 = vsub.s32 0, %v68
    %v70 = vrot.slane %v65, %v69
    %vm72 = vcmask 64512
    %v74 = vsel %vm72, %v62, 0
    %v77 = vsel %vm72, %v63, 0
    %79 = vmatprep.subr.mxu0 0.0
    %80 = vmatpush1.msra.mxu0 %v64
    %81 = vmatprep.subr.mxu0 0.0
    %82 = vmatpush1.msra.mxu0 0.0
    %83 = vmatprep.subr.mxu0 0.0
    %84 = vmatpush1.msra.mxu0 0.0
    %85 = vmatprep.subr.mxu0 0.0
    %86 = vmatpush1.msra.mxu0 0.0
    %87 = vmatprep.subr.mxu0 0.0
    %88 = vmatpush1.msra.mxu0 0.0
    %89 = vmatprep.subr.mxu0 0.0
    %90 = vmatpush1.msra.mxu0 0.0
    %91 = vmatprep.subr.mxu0 0.0
    %92 = vmatpush1.msra.mxu0 0.0
    %93 = vmatprep.subr.mxu0 0.0
    %94 = vmatpush1.msra.mxu0 0.0
    %95 = vmatprep.subr.mxu0 0.0
    %96 = vmatpush1.msra.mxu0 0.0
    %97 = vmatprep.subr.mxu0 0.0
    %98 = vmatpush1.msra.mxu0 0.0
    %99 = vmatprep.subr.mxu0 0.0
    %100 = vmatpush1.msra.mxu0 0.0
    %101 = vmatprep.subr.mxu0 0.0
    %102 = vmatpush1.msra.mxu0 0.0
    %103 = vmatprep.subr.mxu0 0.0
    %104 = vmatpush1.msra.mxu0 0.0
    %105 = vmatprep.subr.mxu0 0.0
    %106 = vmatpush1.msra.mxu0 0.0
    %107 = vmatprep.subr.mxu0 0.0
    %108 = vmatpush1.msra.mxu0 0.0
    %109 = vmatprep.subr.mxu0 0.0
    %110 = vmatpush1.msra.mxu0 0.0
    %111 = vmatprep.subr.mxu0 0.0
    %112 = vmatpush1.msra.mxu0 0.0
    %113 = vmatprep.subr.mxu0 0.0
    %114 = vmatpush1.msra.mxu0 0.0
    %115 = vmatprep.subr.mxu0 0.0
    %116 = vmatpush1.msra.mxu0 0.0
    %117 = vmatprep.subr.mxu0 0.0
    %118 = vmatpush1.msra.mxu0 0.0
    %119 = vmatprep.subr.mxu0 0.0
    %120 = vmatpush1.msra.mxu0 0.0
    %121 = vmatprep.subr.mxu0 0.0
    %122 = vmatpush1.msra.mxu0 0.0
    %123 = vmatprep.subr.mxu0 0.0
    %124 = vmatpush1.msra.mxu0 0.0
    %125 = vmatprep.subr.mxu0 0.0
    %126 = vmatpush1.msra.mxu0 0.0
    %127 = vmatprep.subr.mxu0 0.0
    %128 = vmatpush1.msra.mxu0 0.0
    %129 = vmatprep.subr.mxu0 0.0
    %130 = vmatpush1.msra.mxu0 0.0
    %131 = vmatprep.subr.mxu0 0.0
    %132 = vmatpush1.msra.mxu0 0.0
    %133 = vmatprep.subr.mxu0 0.0
    %134 = vmatpush1.msra.mxu0 0.0
    %135 = vmatprep.subr.mxu0 0.0
    %136 = vmatpush1.msra.mxu0 0.0
    %137 = vmatprep.subr.mxu0 0.0
    %138 = vmatpush1.msra.mxu0 0.0
    %139 = vmatprep.subr.mxu0 0.0
    %140 = vmatpush1.msra.mxu0 0.0
    %141 = vmatprep.subr.mxu0 0.0
    %142 = vmatpush1.msra.mxu0 0.0
    %143 = vmatprep.mubr.f32.mxu0 0.0
    %144 = vmatmul.mubr.f32.gmra.mrb[0].mxu0 %v74
    %v145 = vpop.f32.mrb[0].mxu0
    %v146 = vadd.f32 %v70, %v145
    %v147 = vpop.f32.mrb[0].mxu0
    %148 = vmatprep.mubr.f32.mxu0 0.0
    %149 = vmatmul.mubr.f32.gmra.mrb[0].mxu0 %v77
    %v150 = vpop.f32.mrb[0].mxu0
    %v151 = vadd.f32 %v70, %v150
    %v152 = vpop.f32.mrb[0].mxu0
    %153 = vdwg.mxu0
    %v154 = vld [vmem:[%s4] sm:$0xff]
    %v155 = vld [vmem:[%s4 + $0x8] sm:$0xff]
    %v156 = vld [vmem:[%s4 + $0x10] sm:$0xff]
    %v157 = vld [vmem:[%s4 + $0x18] sm:$0xff]
    %v158 = vld [vmem:[%s4 + $0x20] sm:$0xff]
    %v159 = vld [vmem:[%s4 + $0x28] sm:$0xff]
    %v160 = vld [vmem:[%s4 + $0x30] sm:$0xff]
    %v161 = vld [vmem:[%s4 + $0x38] sm:$0xff]
    %v162 = vld [vmem:[%s4 + $0x40] sm:$0xff]
    %v163 = vld [vmem:[%s4 + $0x48] sm:$0xff]
    %v164 = vld [vmem:[%s4 + $0x50] sm:$0xff]
    %v165 = vld [vmem:[%s4 + $0x58] sm:$0xff]
    %v166 = vld [vmem:[%s4 + $0x60] sm:$0xff]
    %v167 = vld [vmem:[%s4 + $0x68] sm:$0xff]
    %v168 = vld [vmem:[%s4 + $0x70] sm:$0xff]
    %v169 = vld [vmem:[%s4 + $0x78] sm:$0xff]
    %v170 = vld [vmem:[%s5] sm:$0x1]
    %v171 = vxor.u32 %v146, 2147483648
    %v172 = vmul.f32 %v171, 1.442695
    %v173 = vpow.pop %v172
    %v174 = vadd.f32 %v173, 1.0
    %v175 = vrcp.pop %v174
    %v176 = vmul.f32 1.0, %v175
    %v177 = vmul.f32 %v176, 2.0
    %v178 = vsub.f32 %v177, 1.0
    %v179 = vmul.f32 %v176, 0.0
    %181 = vrot.lane.b32.xlu0 %v178, 64
    %v182 = vpop.permute.xlu0 %181
    %v184 = vmul.f32 %v176, %v182
    %186 = vrot.lane.b32.xlu0 %v184, 32
    %v187 = vpop.permute.xlu0 %186
    %v189 = vadd.f32 %v179, %v187
    %v190 = vtanh.pop %v189
    %192 = vrot.lane.b32.xlu0 %v190, 64
    %v193 = vpop.permute.xlu0 %192
    %v195 = vmul.f32 %v176, %v193
    %197 = vrot.lane.b32.xlu0 %v195, 32
    %v198 = vpop.permute.xlu0 %197
    %vm200 = vcmask 261120
    %v201 = vsel %vm200, %v198, 0.0
    %vm202 = vcmask 523264
    %v204 = vsel %vm202, %v201, 0
    %206 = vmatprep.subr.mxu0 %v155
    %207 = vmatpush1.msra.mxu0 %v154
    %208 = vmatprep.subr.mxu0 %v157
    %209 = vmatpush1.msra.mxu0 %v156
    %210 = vmatprep.subr.mxu0 %v159
    %211 = vmatpush1.msra.mxu0 %v158
    %212 = vmatprep.subr.mxu0 %v161
    %213 = vmatpush1.msra.mxu0 %v160
    %214 = vmatprep.subr.mxu0 %v163
    %215 = vmatpush1.msra.mxu0 %v162
    %216 = vmatprep.subr.mxu0 %v165
    %217 = vmatpush1.msra.mxu0 %v164
    %218 = vmatprep.subr.mxu0 %v167
    %219 = vmatpush1.msra.mxu0 %v166
    %220 = vmatprep.subr.mxu0 %v169
    %221 = vmatpush1.msra.mxu0 %v168
    %222 = vmatprep.subr.mxu0 0.0
    %223 = vmatpush1.msra.mxu0 0.0
    %224 = vmatprep.subr.mxu0 0.0
    %225 = vmatpush1.msra.mxu0 0.0
    %226 = vmatprep.subr.mxu0 0.0
    %227 = vmatpush1.msra.mxu0 0.0
    %228 = vmatprep.subr.mxu0 0.0
    %229 = vmatpush1.msra.mxu0 0.0
    %230 = vmatprep.subr.mxu0 0.0
    %231 = vmatpush1.msra.mxu0 0.0
    %232 = vmatprep.subr.mxu0 0.0
    %233 = vmatpush1.msra.mxu0 0.0
    %234 = vmatprep.subr.mxu0 0.0
    %235 = vmatpush1.msra.mxu0 0.0
    %236 = vmatprep.subr.mxu0 0.0
    %237 = vmatpush1.msra.mxu0 0.0
    %238 = vmatprep.subr.mxu0 0.0
    %239 = vmatpush1.msra.mxu0 0.0
    %240 = vmatprep.subr.mxu0 0.0
    %241 = vmatpush1.msra.mxu0 0.0
    %242 = vmatprep.subr.mxu0 0.0
    %243 = vmatpush1.msra.mxu0 0.0
    %244 = vmatprep.subr.mxu0 0.0
    %245 = vmatpush1.msra.mxu0 0.0
    %246 = vmatprep.subr.mxu0 0.0
    %247 = vmatpush1.msra.mxu0 0.0
    %248 = vmatprep.subr.mxu0 0.0
    %249 = vmatpush1.msra.mxu0 0.0
    %250 = vmatprep.subr.mxu0 0.0
    %251 = vmatpush1.msra.mxu0 0.0
    %252 = vmatprep.subr.mxu0 0.0
    %253 = vmatpush1.msra.mxu0 0.0
    %254 = vmatprep.subr.mxu0 0.0
    %255 = vmatpush1.msra.mxu0 0.0
    %256 = vmatprep.subr.mxu0 0.0
    %257 = vmatpush1.msra.mxu0 0.0
    %258 = vmatprep.subr.mxu0 0.0
    %259 = vmatpush1.msra.mxu0 0.0
    %260 = vmatprep.subr.mxu0 0.0
    %261 = vmatpush1.msra.mxu0 0.0
    %262 = vmatprep.subr.mxu0 0.0
    %263 = vmatpush1.msra.mxu0 0.0
    %264 = vmatprep.subr.mxu0 0.0
    %265 = vmatpush1.msra.mxu0 0.0
    %266 = vmatprep.subr.mxu0 0.0
    %267 = vmatpush1.msra.mxu0 0.0
    %268 = vmatprep.subr.mxu0 0.0
    %269 = vmatpush1.msra.mxu0 0.0
    %270 = vmatprep.mubr.f32.mxu0 0.0
    %271 = vmatmul.mubr.f32.gmra.mrb[0].mxu0 %v204
    %v272 = vpop.f32.mrb[0].mxu0
    %v273 = vadd.f32 0.0, %v272
    %v274 = vpop.f32.mrb[0].mxu0
    %v275 = vadd.f32 0.0, %v274
    %276 = vdwg.mxu0
    %v278 = vlaneseq
    %v279 = vshrl.u32 %v278, 7
    %v280 = vsub.s32 0, %v279
    %v281 = vrot.slane %v170, %v280
    %v283 = vadd.f32 %v275, %v281
    %v284 = vxor.u32 %v283, 2147483648
    %v285 = vmul.f32 %v284, 1.442695
    %v286 = vpow.pop %v285
    %v287 = vadd.f32 %v286, 1.0
    %v288 = vrcp.pop %v287
    %v289 = vmul.f32 1.0, %v288
    %v290 = vmul.f32 %v289, 2.0
    %v291 = vsub.f32 %v290, 1.0
    %v292 = vmul.f32 %v289, 0.0
    %294 = vrot.lane.b32.xlu0 %v291, 64
    %v295 = vpop.permute.xlu0 %294
    %v297 = vmul.f32 %v289, %v295
    %299 = vrot.lane.b32.xlu0 %v297, 32
    %v300 = vpop.permute.xlu0 %299
    %v302 = vadd.f32 %v292, %v300
    %v303 = vtanh.pop %v302
    %305 = vrot.lane.b32.xlu0 %v303, 64
    %v306 = vpop.permute.xlu0 %305
    %v308 = vmul.f32 %v289, %v306
    %v310 = vrot.slane %v273, 6
    %v312 = vadd.f32 %v146, %v310
    %v313 = vxor.u32 %v312, 2147483648
    %v314 = vmul.f32 %v313, 1.442695
    %v315 = vpow.pop %v314
    %v316 = vadd.f32 %v315, 1.0
    %v317 = vrcp.pop %v316
    %v318 = vmul.f32 1.0, %v317
    %v319 = vmul.f32 %v318, 2.0
    %v320 = vsub.f32 %v319, 1.0
    %v322 = vrot.slane %v189, 6
    %v324 = vmul.f32 %v318, %v322
    %326 = vrot.lane.b32.xlu0 %v320, 64
    %v327 = vpop.permute.xlu0 %326
    %v329 = vmul.f32 %v318, %v327
    %331 = vrot.lane.b32.xlu0 %v329, 32
    %v332 = vpop.permute.xlu0 %331
    %v334 = vadd.f32 %v324, %v332
    %v335 = vtanh.pop %v334
    %337 = vrot.lane.b32.xlu0 %v335, 64
    %v338 = vpop.permute.xlu0 %337
    %v340 = vmul.f32 %v318, %v338
    %342 = vrot.lane.b32.xlu0 %v340, 32
    %v343 = vpop.permute.xlu0 %342
    %v346 = vrot.slane %v308, 6
    %347 = vrot.lane.b32.xlu0 %v346, 64
    %v348 = vpop.permute.xlu0 %347
    %v350 = vsel %vm200, %v343, %v348
    %v352 = vrot.slane %v350, 2
    %v353 = vsel %vm202, %v352, 0
    %355 = vmatprep.subr.mxu0 %v155
    %356 = vmatpush1.msra.mxu0 %v154
    %357 = vmatprep.subr.mxu0 %v157
    %358 = vmatpush1.msra.mxu0 %v156
    %359 = vmatprep.subr.mxu0 %v159
    %360 = vmatpush1.msra.mxu0 %v158
    %361 = vmatprep.subr.mxu0 %v161
    %362 = vmatpush1.msra.mxu0 %v160
    %363 = vmatprep.subr.mxu0 %v163
    %364 = vmatpush1.msra.mxu0 %v162
    %365 = vmatprep.subr.mxu0 %v165
    %366 = vmatpush1.msra.mxu0 %v164
    %367 = vmatprep.subr.mxu0 %v167
    %368 = vmatpush1.msra.mxu0 %v166
    %369 = vmatprep.subr.mxu0 %v169
    %370 = vmatpush1.msra.mxu0 %v168
    %371 = vmatprep.subr.mxu0 0.0
    %372 = vmatpush1.msra.mxu0 0.0
    %373 = vmatprep.subr.mxu0 0.0
    %374 = vmatpush1.msra.mxu0 0.0
    %375 = vmatprep.subr.mxu0 0.0
    %376 = vmatpush1.msra.mxu0 0.0
    %377 = vmatprep.subr.mxu0 0.0
    %378 = vmatpush1.msra.mxu0 0.0
    %379 = vmatprep.subr.mxu0 0.0
    %380 = vmatpush1.msra.mxu0 0.0
    %381 = vmatprep.subr.mxu0 0.0
    %382 = vmatpush1.msra.mxu0 0.0
    %383 = vmatprep.subr.mxu0 0.0
    %384 = vmatpush1.msra.mxu0 0.0
    %385 = vmatprep.subr.mxu0 0.0
    %386 = vmatpush1.msra.mxu0 0.0
    %387 = vmatprep.subr.mxu0 0.0
    %388 = vmatpush1.msra.mxu0 0.0
    %389 = vmatprep.subr.mxu0 0.0
    %390 = vmatpush1.msra.mxu0 0.0
    %391 = vmatprep.subr.mxu0 0.0
    %392 = vmatpush1.msra.mxu0 0.0
    %393 = vmatprep.subr.mxu0 0.0
    %394 = vmatpush1.msra.mxu0 0.0
    %395 = vmatprep.subr.mxu0 0.0
    %396 = vmatpush1.msra.mxu0 0.0
    %397 = vmatprep.subr.mxu0 0.0
    %398 = vmatpush1.msra.mxu0 0.0
    %399 = vmatprep.subr.mxu0 0.0
    %400 = vmatpush1.msra.mxu0 0.0
    %401 = vmatprep.subr.mxu0 0.0
    %402 = vmatpush1.msra.mxu0 0.0
    %403 = vmatprep.subr.mxu0 0.0
    %404 = vmatpush1.msra.mxu0 0.0
    %405 = vmatprep.subr.mxu0 0.0
    %406 = vmatpush1.msra.mxu0 0.0
    %407 = vmatprep.subr.mxu0 0.0
    %408 = vmatpush1.msra.mxu0 0.0
    %409 = vmatprep.subr.mxu0 0.0
    %410 = vmatpush1.msra.mxu0 0.0
    %411 = vmatprep.subr.mxu0 0.0
    %412 = vmatpush1.msra.mxu0 0.0
    %413 = vmatprep.subr.mxu0 0.0
    %414 = vmatpush1.msra.mxu0 0.0
    %415 = vmatprep.subr.mxu0 0.0
    %416 = vmatpush1.msra.mxu0 0.0
    %417 = vmatprep.subr.mxu0 0.0
    %418 = vmatpush1.msra.mxu0 0.0
    %419 = vmatprep.mubr.f32.mxu0 0.0
    %420 = vmatmul.mubr.f32.gmra.mrb[0].mxu0 %v353
    %v421 = vpop.f32.mrb[0].mxu0
    %v422 = vadd.f32 0.0, %v421
    %v423 = vpop.f32.mrb[0].mxu0
    %v424 = vadd.f32 0.0, %v423
    %425 = vdwg.mxu0
    %v426 = vadd.f32 %v424, %v281
    %v427 = vxor.u32 %v426, 2147483648
    %v428 = vmul.f32 %v427, 1.442695
    %v429 = vpow.pop %v428
    %v430 = vadd.f32 %v429, 1.0
    %v431 = vrcp.pop %v430
    %v432 = vmul.f32 1.0, %v431
    %v433 = vmul.f32 %v432, 2.0
    %v434 = vsub.f32 %v433, 1.0
    %v435 = vmul.f32 %v432, %v302
    %437 = vrot.lane.b32.xlu0 %v434, 64
    %v438 = vpop.permute.xlu0 %437
    %v440 = vmul.f32 %v432, %v438
    %442 = vrot.lane.b32.xlu0 %v440, 32
    %v443 = vpop.permute.xlu0 %442
    %v445 = vadd.f32 %v435, %v443
    %v446 = vtanh.pop %v445
    %448 = vrot.lane.b32.xlu0 %v446, 64
    %v449 = vpop.permute.xlu0 %448
    %v451 = vmul.f32 %v432, %v449
    %v453 = vrot.slane %v422, 4
    %v455 = vadd.f32 %v146, %v453
    %v456 = vxor.u32 %v455, 2147483648
    %v457 = vmul.f32 %v456, 1.442695
    %v458 = vpow.pop %v457
    %v459 = vadd.f32 %v458, 1.0
    %v460 = vrcp.pop %v459
    %v461 = vmul.f32 1.0, %v460
    %v462 = vmul.f32 %v461, 2.0
    %v463 = vsub.f32 %v462, 1.0
    %v465 = vrot.slane %v334, 6
    %v467 = vmul.f32 %v461, %v465
    %469 = vrot.lane.b32.xlu0 %v463, 64
    %v470 = vpop.permute.xlu0 %469
    %v472 = vmul.f32 %v461, %v470
    %474 = vrot.lane.b32.xlu0 %v472, 32
    %v475 = vpop.permute.xlu0 %474
    %v477 = vadd.f32 %v467, %v475
    %v478 = vtanh.pop %v477
    %480 = vrot.lane.b32.xlu0 %v478, 64
    %v481 = vpop.permute.xlu0 %480
    %v483 = vmul.f32 %v461, %v481
    %485 = vrot.lane.b32.xlu0 %v483, 32
    %v486 = vpop.permute.xlu0 %485
    %v489 = vrot.slane %v451, 4
    %490 = vrot.lane.b32.xlu0 %v489, 64
    %v491 = vpop.permute.xlu0 %490
    %v493 = vsel %vm200, %v486, %v491
    %v495 = vrot.slane %v493, 4
    %v496 = vsel %vm202, %v495, 0
    %498 = vmatprep.subr.mxu0 %v155
    %499 = vmatpush1.msra.mxu0 %v154
    %500 = vmatprep.subr.mxu0 %v157
    %501 = vmatpush1.msra.mxu0 %v156
    %502 = vmatprep.subr.mxu0 %v159
    %503 = vmatpush1.msra.mxu0 %v158
    %504 = vmatprep.subr.mxu0 %v161
    %505 = vmatpush1.msra.mxu0 %v160
    %506 = vmatprep.subr.mxu0 %v163
    %507 = vmatpush1.msra.mxu0 %v162
    %508 = vmatprep.subr.mxu0 %v165
    %509 = vmatpush1.msra.mxu0 %v164
    %510 = vmatprep.subr.mxu0 %v167
    %511 = vmatpush1.msra.mxu0 %v166
    %512 = vmatprep.subr.mxu0 %v169
    %513 = vmatpush1.msra.mxu0 %v168
    %514 = vmatprep.subr.mxu0 0.0
    %515 = vmatpush1.msra.mxu0 0.0
    %516 = vmatprep.subr.mxu0 0.0
    %517 = vmatpush1.msra.mxu0 0.0
    %518 = vmatprep.subr.mxu0 0.0
    %519 = vmatpush1.msra.mxu0 0.0
    %520 = vmatprep.subr.mxu0 0.0
    %521 = vmatpush1.msra.mxu0 0.0
    %522 = vmatprep.subr.mxu0 0.0
    %523 = vmatpush1.msra.mxu0 0.0
    %524 = vmatprep.subr.mxu0 0.0
    %525 = vmatpush1.msra.mxu0 0.0
    %526 = vmatprep.subr.mxu0 0.0
    %527 = vmatpush1.msra.mxu0 0.0
    %528 = vmatprep.subr.mxu0 0.0
    %529 = vmatpush1.msra.mxu0 0.0
    %530 = vmatprep.subr.mxu0 0.0
    %531 = vmatpush1.msra.mxu0 0.0
    %532 = vmatprep.subr.mxu0 0.0
    %533 = vmatpush1.msra.mxu0 0.0
    %534 = vmatprep.subr.mxu0 0.0
    %535 = vmatpush1.msra.mxu0 0.0
    %536 = vmatprep.subr.mxu0 0.0
    %537 = vmatpush1.msra.mxu0 0.0
    %538 = vmatprep.subr.mxu0 0.0
    %539 = vmatpush1.msra.mxu0 0.0
    %540 = vmatprep.subr.mxu0 0.0
    %541 = vmatpush1.msra.mxu0 0.0
    %542 = vmatprep.subr.mxu0 0.0
    %543 = vmatpush1.msra.mxu0 0.0
    %544 = vmatprep.subr.mxu0 0.0
    %545 = vmatpush1.msra.mxu0 0.0
    %546 = vmatprep.subr.mxu0 0.0
    %547 = vmatpush1.msra.mxu0 0.0
    %548 = vmatprep.subr.mxu0 0.0
    %549 = vmatpush1.msra.mxu0 0.0
    %550 = vmatprep.subr.mxu0 0.0
    %551 = vmatpush1.msra.mxu0 0.0
    %552 = vmatprep.subr.mxu0 0.0
    %553 = vmatpush1.msra.mxu0 0.0
    %554 = vmatprep.subr.mxu0 0.0
    %555 = vmatpush1.msra.mxu0 0.0
    %556 = vmatprep.subr.mxu0 0.0
    %557 = vmatpush1.msra.mxu0 0.0
    %558 = vmatprep.subr.mxu0 0.0
    %559 = vmatpush1.msra.mxu0 0.0
    %560 = vmatprep.subr.mxu0 0.0
    %561 = vmatpush1.msra.mxu0 0.0
    %562 = vmatprep.mubr.f32.mxu0 0.0
    %563 = vmatmul.mubr.f32.gmra.mrb[0].mxu0 %v496
    %v564 = vpop.f32.mrb[0].mxu0
    %v565 = vadd.f32 0.0, %v564
    %v566 = vpop.f32.mrb[0].mxu0
    %v567 = vadd.f32 0.0, %v566
    %568 = vdwg.mxu0
    %v569 = vadd.f32 %v567, %v281
    %v570 = vxor.u32 %v569, 2147483648
    %v571 = vmul.f32 %v570, 1.442695
    %v572 = vpow.pop %v571
    %v573 = vadd.f32 %v572, 1.0
    %v574 = vrcp.pop %v573
    %v575 = vmul.f32 1.0, %v574
    %v576 = vmul.f32 %v575, 2.0
    %v577 = vsub.f32 %v576, 1.0
    %v578 = vmul.f32 %v575, %v445
    %580 = vrot.lane.b32.xlu0 %v577, 64
    %v581 = vpop.permute.xlu0 %580
    %v583 = vmul.f32 %v575, %v581
    %585 = vrot.lane.b32.xlu0 %v583, 32
    %v586 = vpop.permute.xlu0 %585
    %v588 = vadd.f32 %v578, %v586
    %v589 = vtanh.pop %v588
    %591 = vrot.lane.b32.xlu0 %v589, 64
    %v592 = vpop.permute.xlu0 %591
    %v594 = vmul.f32 %v575, %v592
    %v596 = vrot.slane %v565, 2
    %v598 = vadd.f32 %v146, %v596
    %v599 = vxor.u32 %v598, 2147483648
    %v600 = vmul.f32 %v599, 1.442695
    %v601 = vpow.pop %v600
    %v602 = vadd.f32 %v601, 1.0
    %v603 = vrcp.pop %v602
    %v604 = vmul.f32 1.0, %v603
    %v605 = vmul.f32 %v604, 2.0
    %v606 = vsub.f32 %v605, 1.0
    %v608 = vrot.slane %v477, 6
    %v610 = vmul.f32 %v604, %v608
    %612 = vrot.lane.b32.xlu0 %v606, 64
    %v613 = vpop.permute.xlu0 %612
    %v615 = vmul.f32 %v604, %v613
    %617 = vrot.lane.b32.xlu0 %v615, 32
    %v618 = vpop.permute.xlu0 %617
    %v620 = vadd.f32 %v610, %v618
    %v621 = vtanh.pop %v620
    %623 = vrot.lane.b32.xlu0 %v621, 64
    %v624 = vpop.permute.xlu0 %623
    %v626 = vmul.f32 %v604, %v624
    %628 = vrot.lane.b32.xlu0 %v626, 32
    %v629 = vpop.permute.xlu0 %628
    %v632 = vrot.slane %v594, 2
    %633 = vrot.lane.b32.xlu0 %v632, 64
    %v634 = vpop.permute.xlu0 %633
    %v636 = vsel %vm200, %v629, %v634
    %v638 = vrot.slane %v636, 6
    %v639 = vsel %vm202, %v638, 0
    %641 = vmatprep.subr.mxu0 %v155
    %642 = vmatpush1.msra.mxu0 %v154
    %643 = vmatprep.subr.mxu0 %v157
    %644 = vmatpush1.msra.mxu0 %v156
    %645 = vmatprep.subr.mxu0 %v159
    %646 = vmatpush1.msra.mxu0 %v158
    %647 = vmatprep.subr.mxu0 %v161
    %648 = vmatpush1.msra.mxu0 %v160
    %649 = vmatprep.subr.mxu0 %v163
    %650 = vmatpush1.msra.mxu0 %v162
    %651 = vmatprep.subr.mxu0 %v165
    %652 = vmatpush1.msra.mxu0 %v164
    %653 = vmatprep.subr.mxu0 %v167
    %654 = vmatpush1.msra.mxu0 %v166
    %655 = vmatprep.subr.mxu0 %v169
    %656 = vmatpush1.msra.mxu0 %v168
    %657 = vmatprep.subr.mxu0 0.0
    %658 = vmatpush1.msra.mxu0 0.0
    %659 = vmatprep.subr.mxu0 0.0
    %660 = vmatpush1.msra.mxu0 0.0
    %661 = vmatprep.subr.mxu0 0.0
    %662 = vmatpush1.msra.mxu0 0.0
    %663 = vmatprep.subr.mxu0 0.0
    %664 = vmatpush1.msra.mxu0 0.0
    %665 = vmatprep.subr.mxu0 0.0
    %666 = vmatpush1.msra.mxu0 0.0
    %667 = vmatprep.subr.mxu0 0.0
    %668 = vmatpush1.msra.mxu0 0.0
    %669 = vmatprep.subr.mxu0 0.0
    %670 = vmatpush1.msra.mxu0 0.0
    %671 = vmatprep.subr.mxu0 0.0
    %672 = vmatpush1.msra.mxu0 0.0
    %673 = vmatprep.subr.mxu0 0.0
    %674 = vmatpush1.msra.mxu0 0.0
    %675 = vmatprep.subr.mxu0 0.0
    %676 = vmatpush1.msra.mxu0 0.0
    %677 = vmatprep.subr.mxu0 0.0
    %678 = vmatpush1.msra.mxu0 0.0
    %679 = vmatprep.subr.mxu0 0.0
    %680 = vmatpush1.msra.mxu0 0.0
    %681 = vmatprep.subr.mxu0 0.0
    %682 = vmatpush1.msra.mxu0 0.0
    %683 = vmatprep.subr.mxu0 0.0
    %684 = vmatpush1.msra.mxu0 0.0
    %685 = vmatprep.subr.mxu0 0.0
    %686 = vmatpush1.msra.mxu0 0.0
    %687 = vmatprep.subr.mxu0 0.0
    %688 = vmatpush1.msra.mxu0 0.0
    %689 = vmatprep.subr.mxu0 0.0
    %690 = vmatpush1.msra.mxu0 0.0
    %691 = vmatprep.subr.mxu0 0.0
    %692 = vmatpush1.msra.mxu0 0.0
    %693 = vmatprep.subr.mxu0 0.0
    %694 = vmatpush1.msra.mxu0 0.0
    %695 = vmatprep.subr.mxu0 0.0
    %696 = vmatpush1.msra.mxu0 0.0
    %697 = vmatprep.subr.mxu0 0.0
    %698 = vmatpush1.msra.mxu0 0.0
    %699 = vmatprep.subr.mxu0 0.0
    %700 = vmatpush1.msra.mxu0 0.0
    %701 = vmatprep.subr.mxu0 0.0
    %702 = vmatpush1.msra.mxu0 0.0
    %703 = vmatprep.subr.mxu0 0.0
    %704 = vmatpush1.msra.mxu0 0.0
    %705 = vmatprep.mubr.f32.mxu0 0.0
    %706 = vmatmul.mubr.f32.gmra.mrb[0].mxu0 %v639
    %v707 = vpop.f32.mrb[0].mxu0
    %v708 = vadd.f32 0.0, %v707
    %v709 = vpop.f32.mrb[0].mxu0
    %v710 = vadd.f32 0.0, %v709
    %711 = vdwg.mxu0
    %v712 = vadd.f32 %v710, %v281
    %v713 = vxor.u32 %v712, 2147483648
    %v714 = vmul.f32 %v713, 1.442695
    %v715 = vpow.pop %v714
    %v716 = vadd.f32 %v715, 1.0
    %v717 = vrcp.pop %v716
    %v718 = vmul.f32 1.0, %v717
    %v719 = vmul.f32 %v718, 2.0
    %v720 = vsub.f32 %v719, 1.0
    %v721 = vmul.f32 %v718, %v588
    %723 = vrot.lane.b32.xlu0 %v720, 64
    %v724 = vpop.permute.xlu0 %723
    %v726 = vmul.f32 %v718, %v724
    %728 = vrot.lane.b32.xlu0 %v726, 32
    %v729 = vpop.permute.xlu0 %728
    %v731 = vadd.f32 %v721, %v729
    %v732 = vtanh.pop %v731
    %734 = vrot.lane.b32.xlu0 %v732, 64
    %v735 = vpop.permute.xlu0 %734
    %v737 = vmul.f32 %v718, %v735
    %v738 = vadd.f32 %v151, %v708
    %v739 = vxor.u32 %v738, 2147483648
    %v740 = vmul.f32 %v739, 1.442695
    %v741 = vpow.pop %v740
    %v742 = vadd.f32 %v741, 1.0
    %v743 = vrcp.pop %v742
    %v744 = vmul.f32 1.0, %v743
    %v745 = vmul.f32 %v744, 2.0
    %v746 = vsub.f32 %v745, 1.0
    %v748 = vrot.slane %v620, 6
    %v750 = vmul.f32 %v744, %v748
    %752 = vrot.lane.b32.xlu0 %v746, 64
    %v753 = vpop.permute.xlu0 %752
    %v755 = vmul.f32 %v744, %v753
    %757 = vrot.lane.b32.xlu0 %v755, 32
    %v758 = vpop.permute.xlu0 %757
    %v760 = vadd.f32 %v750, %v758
    %v761 = vtanh.pop %v760
    %763 = vrot.lane.b32.xlu0 %v761, 64
    %v764 = vpop.permute.xlu0 %763
    %v766 = vmul.f32 %v744, %v764
    %768 = vrot.lane.b32.xlu0 %v766, 32
    %v769 = vpop.permute.xlu0 %768
    %772 = vrot.lane.b32.xlu0 %v737, 64
    %v773 = vpop.permute.xlu0 %772
    %v775 = vsel %vm200, %v769, %v773
    %v777 = vsel %vm202, %v775, 0
    %779 = vmatprep.subr.mxu0 %v155
    %780 = vmatpush1.msra.mxu0 %v154
    %781 = vmatprep.subr.mxu0 %v157
    %782 = vmatpush1.msra.mxu0 %v156
    %783 = vmatprep.subr.mxu0 %v159
    %784 = vmatpush1.msra.mxu0 %v158
    %785 = vmatprep.subr.mxu0 %v161
    %786 = vmatpush1.msra.mxu0 %v160
    %787 = vmatprep.subr.mxu0 %v163
    %788 = vmatpush1.msra.mxu0 %v162
    %789 = vmatprep.subr.mxu0 %v165
    %790 = vmatpush1.msra.mxu0 %v164
    %791 = vmatprep.subr.mxu0 %v167
    %792 = vmatpush1.msra.mxu0 %v166
    %793 = vmatprep.subr.mxu0 %v169
    %794 = vmatpush1.msra.mxu0 %v168
    %795 = vmatprep.subr.mxu0 0.0
    %796 = vmatpush1.msra.mxu0 0.0
    %797 = vmatprep.subr.mxu0 0.0
    %798 = vmatpush1.msra.mxu0 0.0
    %799 = vmatprep.subr.mxu0 0.0
    %800 = vmatpush1.msra.mxu0 0.0
    %801 = vmatprep.subr.mxu0 0.0
    %802 = vmatpush1.msra.mxu0 0.0
    %803 = vmatprep.subr.mxu0 0.0
    %804 = vmatpush1.msra.mxu0 0.0
    %805 = vmatprep.subr.mxu0 0.0
    %806 = vmatpush1.msra.mxu0 0.0
    %807 = vmatprep.subr.mxu0 0.0
    %808 = vmatpush1.msra.mxu0 0.0
    %809 = vmatprep.subr.mxu0 0.0
    %810 = vmatpush1.msra.mxu0 0.0
    %811 = vmatprep.subr.mxu0 0.0
    %812 = vmatpush1.msra.mxu0 0.0
    %813 = vmatprep.subr.mxu0 0.0
    %814 = vmatpush1.msra.mxu0 0.0
    %815 = vmatprep.subr.mxu0 0.0
    %816 = vmatpush1.msra.mxu0 0.0
    %817 = vmatprep.subr.mxu0 0.0
    %818 = vmatpush1.msra.mxu0 0.0
    %819 = vmatprep.subr.mxu0 0.0
    %820 = vmatpush1.msra.mxu0 0.0
    %821 = vmatprep.subr.mxu0 0.0
    %822 = vmatpush1.msra.mxu0 0.0
    %823 = vmatprep.subr.mxu0 0.0
    %824 = vmatpush1.msra.mxu0 0.0
    %825 = vmatprep.subr.mxu0 0.0
    %826 = vmatpush1.msra.mxu0 0.0
    %827 = vmatprep.subr.mxu0 0.0
    %828 = vmatpush1.msra.mxu0 0.0
    %829 = vmatprep.subr.mxu0 0.0
    %830 = vmatpush1.msra.mxu0 0.0
    %831 = vmatprep.subr.mxu0 0.0
    %832 = vmatpush1.msra.mxu0 0.0
    %833 = vmatprep.subr.mxu0 0.0
    %834 = vmatpush1.msra.mxu0 0.0
    %835 = vmatprep.subr.mxu0 0.0
    %836 = vmatpush1.msra.mxu0 0.0
    %837 = vmatprep.subr.mxu0 0.0
    %838 = vmatpush1.msra.mxu0 0.0
    %839 = vmatprep.subr.mxu0 0.0
    %840 = vmatpush1.msra.mxu0 0.0
    %841 = vmatprep.subr.mxu0 0.0
    %842 = vmatpush1.msra.mxu0 0.0
    %843 = vmatprep.mubr.f32.mxu0 0.0
    %844 = vmatmul.mubr.f32.gmra.mrb[0].mxu0 %v777
    %v845 = vpop.f32.mrb[0].mxu0
    %v846 = vadd.f32 0.0, %v845
    %v847 = vpop.f32.mrb[0].mxu0
    %v848 = vadd.f32 0.0, %v847
    %849 = vdwg.mxu0
    %v850 = vadd.f32 %v848, %v281
    %v851 = vxor.u32 %v850, 2147483648
    %v852 = vmul.f32 %v851, 1.442695
    %v853 = vpow.pop %v852
    %v854 = vadd.f32 %v853, 1.0
    %v855 = vrcp.pop %v854
    %v856 = vmul.f32 1.0, %v855
    %v857 = vmul.f32 %v856, 2.0
    %v858 = vsub.f32 %v857, 1.0
    %v859 = vmul.f32 %v856, %v731
    %861 = vrot.lane.b32.xlu0 %v858, 64
    %v862 = vpop.permute.xlu0 %861
    %v864 = vmul.f32 %v856, %v862
    %866 = vrot.lane.b32.xlu0 %v864, 32
    %v867 = vpop.permute.xlu0 %866
    %v869 = vadd.f32 %v859, %v867
    %v870 = vtanh.pop %v869
    %872 = vrot.lane.b32.xlu0 %v870, 64
    %v873 = vpop.permute.xlu0 %872
    %v875 = vmul.f32 %v856, %v873
    %v877 = vrot.slane %v846, 6
    %v879 = vadd.f32 %v151, %v877
    %v880 = vxor.u32 %v879, 2147483648
    %v881 = vmul.f32 %v880, 1.442695
    %v882 = vpow.pop %v881
    %v883 = vadd.f32 %v882, 1.0
    %v884 = vrcp.pop %v883
    %v885 = vmul.f32 1.0, %v884
    %v886 = vmul.f32 %v885, 2.0
    %v887 = vsub.f32 %v886, 1.0
    %v889 = vrot.slane %v760, 6
    %v891 = vmul.f32 %v885, %v889
    %893 = vrot.lane.b32.xlu0 %v887, 64
    %v894 = vpop.permute.xlu0 %893
    %v896 = vmul.f32 %v885, %v894
    %898 = vrot.lane.b32.xlu0 %v896, 32
    %v899 = vpop.permute.xlu0 %898
    %v901 = vadd.f32 %v891, %v899
    %v902 = vtanh.pop %v901
    %904 = vrot.lane.b32.xlu0 %v902, 64
    %v905 = vpop.permute.xlu0 %904
    %v907 = vmul.f32 %v885, %v905
    %909 = vrot.lane.b32.xlu0 %v907, 32
    %v910 = vpop.permute.xlu0 %909
    %v913 = vrot.slane %v875, 6
    %914 = vrot.lane.b32.xlu0 %v913, 64
    %v915 = vpop.permute.xlu0 %914
    %v917 = vsel %vm200, %v910, %v915
    %v919 = vrot.slane %v917, 2
    %v920 = vsel %vm202, %v919, 0
    %922 = vmatprep.subr.mxu0 %v155
    %923 = vmatpush1.msra.mxu0 %v154
    %924 = vmatprep.subr.mxu0 %v157
    %925 = vmatpush1.msra.mxu0 %v156
    %926 = vmatprep.subr.mxu0 %v159
    %927 = vmatpush1.msra.mxu0 %v158
    %928 = vmatprep.subr.mxu0 %v161
    %929 = vmatpush1.msra.mxu0 %v160
    %930 = vmatprep.subr.mxu0 %v163
    %931 = vmatpush1.msra.mxu0 %v162
    %932 = vmatprep.subr.mxu0 %v165
    %933 = vmatpush1.msra.mxu0 %v164
    %934 = vmatprep.subr.mxu0 %v167
    %935 = vmatpush1.msra.mxu0 %v166
    %936 = vmatprep.subr.mxu0 %v169
    %937 = vmatpush1.msra.mxu0 %v168
    %938 = vmatprep.subr.mxu0 0.0
    %939 = vmatpush1.msra.mxu0 0.0
    %940 = vmatprep.subr.mxu0 0.0
    %941 = vmatpush1.msra.mxu0 0.0
    %942 = vmatprep.subr.mxu0 0.0
    %943 = vmatpush1.msra.mxu0 0.0
    %944 = vmatprep.subr.mxu0 0.0
    %945 = vmatpush1.msra.mxu0 0.0
    %946 = vmatprep.subr.mxu0 0.0
    %947 = vmatpush1.msra.mxu0 0.0
    %948 = vmatprep.subr.mxu0 0.0
    %949 = vmatpush1.msra.mxu0 0.0
    %950 = vmatprep.subr.mxu0 0.0
    %951 = vmatpush1.msra.mxu0 0.0
    %952 = vmatprep.subr.mxu0 0.0
    %953 = vmatpush1.msra.mxu0 0.0
    %954 = vmatprep.subr.mxu0 0.0
    %955 = vmatpush1.msra.mxu0 0.0
    %956 = vmatprep.subr.mxu0 0.0
    %957 = vmatpush1.msra.mxu0 0.0
    %958 = vmatprep.subr.mxu0 0.0
    %959 = vmatpush1.msra.mxu0 0.0
    %960 = vmatprep.subr.mxu0 0.0
    %961 = vmatpush1.msra.mxu0 0.0
    %962 = vmatprep.subr.mxu0 0.0
    %963 = vmatpush1.msra.mxu0 0.0
    %964 = vmatprep.subr.mxu0 0.0
    %965 = vmatpush1.msra.mxu0 0.0
    %966 = vmatprep.subr.mxu0 0.0
    %967 = vmatpush1.msra.mxu0 0.0
    %968 = vmatprep.subr.mxu0 0.0
    %969 = vmatpush1.msra.mxu0 0.0
    %970 = vmatprep.subr.mxu0 0.0
    %971 = vmatpush1.msra.mxu0 0.0
    %972 = vmatprep.subr.mxu0 0.0
    %973 = vmatpush1.msra.mxu0 0.0
    %974 = vmatprep.subr.mxu0 0.0
    %975 = vmatpush1.msra.mxu0 0.0
    %976 = vmatprep.subr.mxu0 0.0
    %977 = vmatpush1.msra.mxu0 0.0
    %978 = vmatprep.subr.mxu0 0.0
    %979 = vmatpush1.msra.mxu0 0.0
    %980 = vmatprep.subr.mxu0 0.0
    %981 = vmatpush1.msra.mxu0 0.0
    %982 = vmatprep.subr.mxu0 0.0
    %983 = vmatpush1.msra.mxu0 0.0
    %984 = vmatprep.subr.mxu0 0.0
    %985 = vmatpush1.msra.mxu0 0.0
    %986 = vmatprep.mubr.f32.mxu0 0.0
    %987 = vmatmul.mubr.f32.gmra.mrb[0].mxu0 %v920
    %v988 = vpop.f32.mrb[0].mxu0
    %v989 = vadd.f32 0.0, %v988
    %v990 = vpop.f32.mrb[0].mxu0
    %v991 = vadd.f32 0.0, %v990
    %992 = vdwg.mxu0
    %v993 = vadd.f32 %v991, %v281
    %v994 = vxor.u32 %v993, 2147483648
    %v995 = vmul.f32 %v994, 1.442695
    %v996 = vpow.pop %v995
    %v997 = vadd.f32 %v996, 1.0
    %v998 = vrcp.pop %v997
    %v999 = vmul.f32 1.0, %v998
    %v1000 = vmul.f32 %v999, 2.0
    %v1001 = vsub.f32 %v1000, 1.0
    %v1002 = vmul.f32 %v999, %v869
    %1004 = vrot.lane.b32.xlu0 %v1001, 64
    %v1005 = vpop.permute.xlu0 %1004
    %v1007 = vmul.f32 %v999, %v1005
    %1009 = vrot.lane.b32.xlu0 %v1007, 32
    %v1010 = vpop.permute.xlu0 %1009
    %v1012 = vadd.f32 %v1002, %v1010
    %v1013 = vtanh.pop %v1012
    %1015 = vrot.lane.b32.xlu0 %v1013, 64
    %v1016 = vpop.permute.xlu0 %1015
    %v1018 = vmul.f32 %v999, %v1016
    %v1020 = vrot.slane %v989, 4
    %v1022 = vadd.f32 %v151, %v1020
    %v1023 = vxor.u32 %v1022, 2147483648
    %v1024 = vmul.f32 %v1023, 1.442695
    %v1025 = vpow.pop %v1024
    %v1026 = vadd.f32 %v1025, 1.0
    %v1027 = vrcp.pop %v1026
    %v1028 = vmul.f32 1.0, %v1027
    %v1029 = vmul.f32 %v1028, 2.0
    %v1030 = vsub.f32 %v1029, 1.0
    %v1032 = vrot.slane %v901, 6
    %v1034 = vmul.f32 %v1028, %v1032
    %1036 = vrot.lane.b32.xlu0 %v1030, 64
    %v1037 = vpop.permute.xlu0 %1036
    %v1039 = vmul.f32 %v1028, %v1037
    %1041 = vrot.lane.b32.xlu0 %v1039, 32
    %v1042 = vpop.permute.xlu0 %1041
    %v1044 = vadd.f32 %v1034, %v1042
    %v1045 = vtanh.pop %v1044
    %1047 = vrot.lane.b32.xlu0 %v1045, 64
    %v1048 = vpop.permute.xlu0 %1047
    %v1050 = vmul.f32 %v1028, %v1048
    %1052 = vrot.lane.b32.xlu0 %v1050, 32
    %v1053 = vpop.permute.xlu0 %1052
    %v1056 = vrot.slane %v1018, 4
    %1057 = vrot.lane.b32.xlu0 %v1056, 64
    %v1058 = vpop.permute.xlu0 %1057
    %v1060 = vsel %vm200, %v1053, %v1058
    %v1062 = vrot.slane %v1060, 4
    %v1063 = vsel %vm202, %v1062, 0
    %1065 = vmatprep.subr.mxu0 %v155
    %1066 = vmatpush1.msra.mxu0 %v154
    %1067 = vmatprep.subr.mxu0 %v157
    %1068 = vmatpush1.msra.mxu0 %v156
    %1069 = vmatprep.subr.mxu0 %v159
    %1070 = vmatpush1.msra.mxu0 %v158
    %1071 = vmatprep.subr.mxu0 %v161
    %1072 = vmatpush1.msra.mxu0 %v160
    %1073 = vmatprep.subr.mxu0 %v163
    %1074 = vmatpush1.msra.mxu0 %v162
    %1075 = vmatprep.subr.mxu0 %v165
    %1076 = vmatpush1.msra.mxu0 %v164
    %1077 = vmatprep.subr.mxu0 %v167
    %1078 = vmatpush1.msra.mxu0 %v166
    %1079 = vmatprep.subr.mxu0 %v169
    %1080 = vmatpush1.msra.mxu0 %v168
    %1081 = vmatprep.subr.mxu0 0.0
    %1082 = vmatpush1.msra.mxu0 0.0
    %1083 = vmatprep.subr.mxu0 0.0
    %1084 = vmatpush1.msra.mxu0 0.0
    %1085 = vmatprep.subr.mxu0 0.0
    %1086 = vmatpush1.msra.mxu0 0.0
    %1087 = vmatprep.subr.mxu0 0.0
    %1088 = vmatpush1.msra.mxu0 0.0
    %1089 = vmatprep.subr.mxu0 0.0
    %1090 = vmatpush1.msra.mxu0 0.0
    %1091 = vmatprep.subr.mxu0 0.0
    %1092 = vmatpush1.msra.mxu0 0.0
    %1093 = vmatprep.subr.mxu0 0.0
    %1094 = vmatpush1.msra.mxu0 0.0
    %1095 = vmatprep.subr.mxu0 0.0
    %1096 = vmatpush1.msra.mxu0 0.0
    %1097 = vmatprep.subr.mxu0 0.0
    %1098 = vmatpush1.msra.mxu0 0.0
    %1099 = vmatprep.subr.mxu0 0.0
    %1100 = vmatpush1.msra.mxu0 0.0
    %1101 = vmatprep.subr.mxu0 0.0
    %1102 = vmatpush1.msra.mxu0 0.0
    %1103 = vmatprep.subr.mxu0 0.0
    %1104 = vmatpush1.msra.mxu0 0.0
    %1105 = vmatprep.subr.mxu0 0.0
    %1106 = vmatpush1.msra.mxu0 0.0
    %1107 = vmatprep.subr.mxu0 0.0
    %1108 = vmatpush1.msra.mxu0 0.0
    %1109 = vmatprep.subr.mxu0 0.0
    %1110 = vmatpush1.msra.mxu0 0.0
    %1111 = vmatprep.subr.mxu0 0.0
    %1112 = vmatpush1.msra.mxu0 0.0
    %1113 = vmatprep.subr.mxu0 0.0
    %1114 = vmatpush1.msra.mxu0 0.0
    %1115 = vmatprep.subr.mxu0 0.0
    %1116 = vmatpush1.msra.mxu0 0.0
    %1117 = vmatprep.subr.mxu0 0.0
    %1118 = vmatpush1.msra.mxu0 0.0
    %1119 = vmatprep.subr.mxu0 0.0
    %1120 = vmatpush1.msra.mxu0 0.0
    %1121 = vmatprep.subr.mxu0 0.0
    %1122 = vmatpush1.msra.mxu0 0.0
    %1123 = vmatprep.subr.mxu0 0.0
    %1124 = vmatpush1.msra.mxu0 0.0
    %1125 = vmatprep.subr.mxu0 0.0
    %1126 = vmatpush1.msra.mxu0 0.0
    %1127 = vmatprep.subr.mxu0 0.0
    %1128 = vmatpush1.msra.mxu0 0.0
    %1129 = vmatprep.mubr.f32.mxu0 0.0
    %1130 = vmatmul.mubr.f32.gmra.mrb[0].mxu0 %v1063
    %v1131 = vpop.f32.mrb[0].mxu0
    %v1132 = vadd.f32 0.0, %v1131
    %v1133 = vpop.f32.mrb[0].mxu0
    %v1134 = vadd.f32 0.0, %v1133
    %1135 = vdwg.mxu0
    %v1136 = vadd.f32 %v1134, %v281
    %v1137 = vxor.u32 %v1136, 2147483648
    %v1138 = vmul.f32 %v1137, 1.442695
    %v1139 = vpow.pop %v1138
    %v1140 = vadd.f32 %v1139, 1.0
    %v1141 = vrcp.pop %v1140
    %v1142 = vmul.f32 1.0, %v1141
    %v1143 = vmul.f32 %v1142, 2.0
    %v1144 = vsub.f32 %v1143, 1.0
    %v1145 = vmul.f32 %v1142, %v1012
    %1147 = vrot.lane.b32.xlu0 %v1144, 64
    %v1148 = vpop.permute.xlu0 %1147
    %v1150 = vmul.f32 %v1142, %v1148
    %1152 = vrot.lane.b32.xlu0 %v1150, 32
    %v1153 = vpop.permute.xlu0 %1152
    %v1155 = vadd.f32 %v1145, %v1153
    %v1156 = vtanh.pop %v1155
    %1158 = vrot.lane.b32.xlu0 %v1156, 64
    %v1159 = vpop.permute.xlu0 %1158
    %v1161 = vmul.f32 %v1142, %v1159
    %v1163 = vrot.slane %v1132, 2
    %v1165 = vadd.f32 %v151, %v1163
    %v1166 = vxor.u32 %v1165, 2147483648
    %v1167 = vmul.f32 %v1166, 1.442695
    %v1168 = vpow.pop %v1167
    %v1169 = vadd.f32 %v1168, 1.0
    %v1170 = vrcp.pop %v1169
    %v1171 = vmul.f32 1.0, %v1170
    %v1172 = vmul.f32 %v1171, 2.0
    %v1173 = vsub.f32 %v1172, 1.0
    %v1175 = vrot.slane %v1044, 6
    %v1177 = vmul.f32 %v1171, %v1175
    %1179 = vrot.lane.b32.xlu0 %v1173, 64
    %v1180 = vpop.permute.xlu0 %1179
    %v1182 = vmul.f32 %v1171, %v1180
    %1184 = vrot.lane.b32.xlu0 %v1182, 32
    %v1185 = vpop.permute.xlu0 %1184
    %v1187 = vadd.f32 %v1177, %v1185
    %v1188 = vtanh.pop %v1187
    %1190 = vrot.lane.b32.xlu0 %v1188, 64
    %v1191 = vpop.permute.xlu0 %1190
    %v1193 = vmul.f32 %v1171, %v1191
    %1195 = vrot.lane.b32.xlu0 %v1193, 32
    %v1196 = vpop.permute.xlu0 %1195
    %v1199 = vrot.slane %v1161, 2
    %1200 = vrot.lane.b32.xlu0 %v1199, 64
    %v1201 = vpop.permute.xlu0 %1200
    %v1203 = vsel %vm200, %v1196, %v1201
    %v1205 = vrot.slane %v1203, 6
    %v1206 = vsel %vm202, %v1205, 0
    %1208 = vmatprep.subr.mxu0 %v155
    %1209 = vmatpush1.msra.mxu0 %v154
    %1210 = vmatprep.subr.mxu0 %v157
    %1211 = vmatpush1.msra.mxu0 %v156
    %1212 = vmatprep.subr.mxu0 %v159
    %1213 = vmatpush1.msra.mxu0 %v158
    %1214 = vmatprep.subr.mxu0 %v161
    %1215 = vmatpush1.msra.mxu0 %v160
    %1216 = vmatprep.subr.mxu0 %v163
    %1217 = vmatpush1.msra.mxu0 %v162
    %1218 = vmatprep.subr.mxu0 %v165
    %1219 = vmatpush1.msra.mxu0 %v164
    %1220 = vmatprep.subr.mxu0 %v167
    %1221 = vmatpush1.msra.mxu0 %v166
    %1222 = vmatprep.subr.mxu0 %v169
    %1223 = vmatpush1.msra.mxu0 %v168
    %1224 = vmatprep.subr.mxu0 0.0
    %1225 = vmatpush1.msra.mxu0 0.0
    %1226 = vmatprep.subr.mxu0 0.0
    %1227 = vmatpush1.msra.mxu0 0.0
    %1228 = vmatprep.subr.mxu0 0.0
    %1229 = vmatpush1.msra.mxu0 0.0
    %1230 = vmatprep.subr.mxu0 0.0
    %1231 = vmatpush1.msra.mxu0 0.0
    %1232 = vmatprep.subr.mxu0 0.0
    %1233 = vmatpush1.msra.mxu0 0.0
    %1234 = vmatprep.subr.mxu0 0.0
    %1235 = vmatpush1.msra.mxu0 0.0
    %1236 = vmatprep.subr.mxu0 0.0
    %1237 = vmatpush1.msra.mxu0 0.0
    %1238 = vmatprep.subr.mxu0 0.0
    %1239 = vmatpush1.msra.mxu0 0.0
    %1240 = vmatprep.subr.mxu0 0.0
    %1241 = vmatpush1.msra.mxu0 0.0
    %1242 = vmatprep.subr.mxu0 0.0
    %1243 = vmatpush1.msra.mxu0 0.0
    %1244 = vmatprep.subr.mxu0 0.0
    %1245 = vmatpush1.msra.mxu0 0.0
    %1246 = vmatprep.subr.mxu0 0.0
    %1247 = vmatpush1.msra.mxu0 0.0
    %1248 = vmatprep.subr.mxu0 0.0
    %1249 = vmatpush1.msra.mxu0 0.0
    %1250 = vmatprep.subr.mxu0 0.0
    %1251 = vmatpush1.msra.mxu0 0.0
    %1252 = vmatprep.subr.mxu0 0.0
    %1253 = vmatpush1.msra.mxu0 0.0
    %1254 = vmatprep.subr.mxu0 0.0
    %1255 = vmatpush1.msra.mxu0 0.0
    %1256 = vmatprep.subr.mxu0 0.0
    %1257 = vmatpush1.msra.mxu0 0.0
    %1258 = vmatprep.subr.mxu0 0.0
    %1259 = vmatpush1.msra.mxu0 0.0
    %1260 = vmatprep.subr.mxu0 0.0
    %1261 = vmatpush1.msra.mxu0 0.0
    %1262 = vmatprep.subr.mxu0 0.0
    %1263 = vmatpush1.msra.mxu0 0.0
    %1264 = vmatprep.subr.mxu0 0.0
    %1265 = vmatpush1.msra.mxu0 0.0
    %1266 = vmatprep.subr.mxu0 0.0
    %1267 = vmatpush1.msra.mxu0 0.0
    %1268 = vmatprep.subr.mxu0 0.0
    %1269 = vmatpush1.msra.mxu0 0.0
    %1270 = vmatprep.subr.mxu0 0.0
    %1271 = vmatpush1.msra.mxu0 0.0
    %1272 = vmatprep.mubr.f32.mxu0 0.0
    %1273 = vmatmul.mubr.f32.gmra.mrb[0].mxu0 %v1206
    %v1274 = vpop.f32.mrb[0].mxu0
    %v1275 = vpop.f32.mrb[0].mxu0
    %v1276 = vadd.f32 0.0, %v1275
    %1277 = vdwg.mxu0
    %v1278 = vadd.f32 %v1276, %v281
    %v1279 = vxor.u32 %v1278, 2147483648
    %v1280 = vmul.f32 %v1279, 1.442695
    %v1281 = vpow.pop %v1280
    %v1282 = vadd.f32 %v1281, 1.0
    %v1283 = vrcp.pop %v1282
    %v1284 = vmul.f32 1.0, %v1283
    %v1285 = vmul.f32 %v1284, 2.0
    %v1286 = vsub.f32 %v1285, 1.0
    %v1287 = vmul.f32 %v1284, %v1155
    %1289 = vrot.lane.b32.xlu0 %v1286, 64
    %v1290 = vpop.permute.xlu0 %1289
    %v1292 = vmul.f32 %v1284, %v1290
    %1294 = vrot.lane.b32.xlu0 %v1292, 32
    %v1295 = vpop.permute.xlu0 %1294
    %v1297 = vadd.f32 %v1287, %v1295
    %v1298 = vtanh.pop %v1297
    %1300 = vrot.lane.b32.xlu0 %v1298, 64
    %v1301 = vpop.permute.xlu0 %1300
    %v1303 = vmul.f32 %v1284, %v1301
    %v1304 = vld [vmem:[%s6] sm:$0xff]
    %v1305 = vld [vmem:[%s6 + $0x8] sm:$0xff]
    %v1306 = vld [vmem:[%s6 + $0x10] sm:$0xff]
    %v1307 = vld [vmem:[%s6 + $0x18] sm:$0xff]
    %v1308 = vld [vmem:[%s7] sm:$0x1]
    %v1310 = vlaneseq
    %v1311 = vshrl.u32 %v1310, 7
    %v1312 = vsub.s32 0, %v1311
    %v1313 = vrot.slane %v1308, %v1312
    %1316 = vrot.lane.b32.xlu0 %v1303, 32
    %v1317 = vpop.permute.xlu0 %1316
    %v1318 = vsel %vm200, %v1317, 0
    %1320 = vmatprep.subr.mxu0 0.0
    %1321 = vmatpush1.msra.mxu0 %v1304
    %1322 = vmatprep.subr.mxu0 0.0
    %1323 = vmatpush1.msra.mxu0 %v1305
    %1324 = vmatprep.subr.mxu0 0.0
    %1325 = vmatpush1.msra.mxu0 %v1306
    %1326 = vmatprep.subr.mxu0 0.0
    %1327 = vmatpush1.msra.mxu0 %v1307
    %1328 = vmatprep.subr.mxu0 0.0
    %1329 = vmatpush1.msra.mxu0 0.0
    %1330 = vmatprep.subr.mxu0 0.0
    %1331 = vmatpush1.msra.mxu0 0.0
    %1332 = vmatprep.subr.mxu0 0.0
    %1333 = vmatpush1.msra.mxu0 0.0
    %1334 = vmatprep.subr.mxu0 0.0
    %1335 = vmatpush1.msra.mxu0 0.0
    %1336 = vmatprep.subr.mxu0 0.0
    %1337 = vmatpush1.msra.mxu0 0.0
    %1338 = vmatprep.subr.mxu0 0.0
    %1339 = vmatpush1.msra.mxu0 0.0
    %1340 = vmatprep.subr.mxu0 0.0
    %1341 = vmatpush1.msra.mxu0 0.0
    %1342 = vmatprep.subr.mxu0 0.0
    %1343 = vmatpush1.msra.mxu0 0.0
    %1344 = vmatprep.subr.mxu0 0.0
    %1345 = vmatpush1.msra.mxu0 0.0
    %1346 = vmatprep.subr.mxu0 0.0
    %1347 = vmatpush1.msra.mxu0 0.0
    %1348 = vmatprep.subr.mxu0 0.0
    %1349 = vmatpush1.msra.mxu0 0.0
    %1350 = vmatprep.subr.mxu0 0.0
    %1351 = vmatpush1.msra.mxu0 0.0
    %1352 = vmatprep.subr.mxu0 0.0
    %1353 = vmatpush1.msra.mxu0 0.0
    %1354 = vmatprep.subr.mxu0 0.0
    %1355 = vmatpush1.msra.mxu0 0.0
    %1356 = vmatprep.subr.mxu0 0.0
    %1357 = vmatpush1.msra.mxu0 0.0
    %1358 = vmatprep.subr.mxu0 0.0
    %1359 = vmatpush1.msra.mxu0 0.0
    %1360 = vmatprep.subr.mxu0 0.0
    %1361 = vmatpush1.msra.mxu0 0.0
    %1362 = vmatprep.subr.mxu0 0.0
    %1363 = vmatpush1.msra.mxu0 0.0
    %1364 = vmatprep.subr.mxu0 0.0
    %1365 = vmatpush1.msra.mxu0 0.0
    %1366 = vmatprep.subr.mxu0 0.0
    %1367 = vmatpush1.msra.mxu0 0.0
    %1368 = vmatprep.subr.mxu0 0.0
    %1369 = vmatpush1.msra.mxu0 0.0
    %1370 = vmatprep.subr.mxu0 0.0
    %1371 = vmatpush1.msra.mxu0 0.0
    %1372 = vmatprep.subr.mxu0 0.0
    %1373 = vmatpush1.msra.mxu0 0.0
    %1374 = vmatprep.subr.mxu0 0.0
    %1375 = vmatpush1.msra.mxu0 0.0
    %1376 = vmatprep.subr.mxu0 0.0
    %1377 = vmatpush1.msra.mxu0 0.0
    %1378 = vmatprep.subr.mxu0 0.0
    %1379 = vmatpush1.msra.mxu0 0.0
    %1380 = vmatprep.subr.mxu0 0.0
    %1381 = vmatpush1.msra.mxu0 0.0
    %1382 = vmatprep.subr.mxu0 0.0
    %1383 = vmatpush1.msra.mxu0 0.0
    %1384 = vmatprep.mubr.f32.mxu0 0.0
    %1385 = vmatmul.mubr.f32.gmra.mrb[0].mxu0 %v1318
    %v1386 = vpop.f32.mrb[0].mxu0
    %v1387 = vadd.f32 %v1313, %v1386
    %v1388 = vpop.f32.mrb[0].mxu0
    %1389 = vdwg.mxu0
    %1390 = vst [vmem:[#allocation2] sm:$0x3] %v1387
    // Predicated region
    $region34: #{lstmdqn_forward.1} parent=1 // pred_check
      _
    $region35: #{lstmdqn_forward.1} parent=1 // pred_check_branch
      %1392 = sbr.rel (0) target = $region37
    $region36: #{lstmdqn_forward.1} parent=1 // pred_region
      %s1394 = ssub.s32 32, 32
      %1395 = vsyncadd [#allocation3], %s1394
      %s1397 = sshll.u32 [#allocation2], 4
      %s1398 = int_to_ptr.vmem [resolvable:$true] %s1397
      %1400 = dma.vmem_to_hbm [thread:$0]  %s1398, 32, %s8, [#allocation3]
    $region37: #{lstmdqn_forward.1} parent=1 // pred_fallthru
      _
    // Predicated region
    $region38: #{lstmdqn_forward.1} parent=1 // pred_check
      _
    $region39: #{lstmdqn_forward.1} parent=1 // pred_check_branch
      %1402 = sbr.rel (0) target = $region41
    $region40: #{lstmdqn_forward.1} parent=1 // pred_region
      %1403 = dma.done [#allocation3], 32
    $region41: #{lstmdqn_forward.1} parent=1 // pred_fallthru
      _
    %1404 = vsyncpa [#allocation3], 1

</llo_original>
